<compile_context>
chip_gen: v7x
topology: tpu7x:2x2x1
jax: 0.10.0
libtpu: 0.0.40
codegen_flags: <defaults>
</compile_context>

<pallas_src>
import functools

import jax
import jax.numpy as jnp
from jax import lax
from jax.experimental import pallas as pl
from jax.experimental.pallas import tpu as pltpu

K = 3  # conv kernel size


def _round_up(n, m):
    return ((n + m - 1) // m) * m


def sft_kernel(x_ref, g_ref,
               w_enc_ref, b_enc_ref,
               w_ss_ref, b_ss_ref,
               w_dec_ref, b_dec_ref,
               out_ref, *, H, W):
    HW = H * W
    Ci = w_enc_ref.shape[0]           # inter_ch

    # --- border-validity masks in flattened (H*W) output coordinates -------
    p_i = lax.broadcasted_iota(jnp.int32, (1, HW), 1)
    if (W & (W - 1)) == 0:            # power-of-two width: bitwise mod
        col = p_i & (W - 1)
    else:                             # general width: float-floor based mod
        col = p_i - (jnp.floor(p_i.astype(jnp.float32) / float(W))
                     ).astype(jnp.int32) * W
    m_top = jnp.where(p_i >= W, 1.0, 0.0)              # row-1 in bounds
    m_bot = jnp.where(p_i < (H - 1) * W, 1.0, 0.0)     # row+1 in bounds
    m_lft = jnp.where(col >= 1, 1.0, 0.0)              # col-1 in bounds
    m_rgt = jnp.where(col < W - 1, 1.0, 0.0)           # col+1 in bounds

    def im2col(v):
        """v: (C, H*W) f32 -> (9*C, H*W); tap rows ordered (dy, dx, c)."""
        taps = []
        for dyp in (-1, 0, 1):
            for dxp in (-1, 0, 1):
                off = dyp * W + dxp
                t = v if off == 0 else pltpu.roll(v, (HW - off) % HW, axis=1)
                m = None
                if dyp == -1:
                    m = m_top
                elif dyp == 1:
                    m = m_bot
                if dxp == -1:
                    m = m_lft if m is None else m * m_lft
                elif dxp == 1:
                    m = m_rgt if m is None else m * m_rgt
                if m is not None:
                    t = t * m                     # (1,HW) mask broadcast
                taps.append(t)
        return jnp.concatenate(taps, axis=0)

    x = x_ref[0].astype(jnp.float32)              # (Cp, HW)
    g = g_ref[0].astype(jnp.float32)              # (Cp, HW)

    # encoder conv (LeakyReLU(negative_slope=1.0) is the identity -> omitted)
    enc = jnp.dot(w_enc_ref[...], im2col(x),
                  preferred_element_type=jnp.float32) + b_enc_ref[...]

    # fused scale/shift conv on the guide (one matmul, split afterwards)
    ss = jnp.dot(w_ss_ref[...], im2col(g),
                 preferred_element_type=jnp.float32) + b_ss_ref[...]
    scale = ss[:Ci]
    shift = ss[Ci:]

    h = enc + enc * scale + shift                 # (Ci, HW)

    # decoder conv: single matmul with contraction depth 9*Ci
    dec = jnp.dot(w_dec_ref[...], im2col(h),
                  preferred_element_type=jnp.float32) + b_dec_ref[...]
    out_ref[0] = dec.astype(out_ref.dtype)        # (Cout, HW) lane-dense store


def sft_layer_pallas(x, guide, p):
    """x, guide: NCHW float32.  Returns NCHW float32."""
    N, Cin, H, W = x.shape
    HW = H * W
    Ci = p["w_enc"].shape[-1]
    Cout = p["w_dec"].shape[-1]
    assert Ci % 8 == 0, "inter_ch assumed to be a multiple of 8 (default 32)"

    # Pad input channels to a sublane multiple; padded channels get zero
    # weights so results are unchanged.
    Cp = _round_up(Cin, 8)
    x_f = jnp.pad(x.reshape(N, Cin, HW), ((0, 0), (0, Cp - Cin), (0, 0)))
    g_f = jnp.pad(guide.reshape(N, Cin, HW), ((0, 0), (0, Cp - Cin), (0, 0)))

    def conv_mat(w):                  # (K,K,Cin,Co) HWIO -> (Co, 9*Cp)
        co = w.shape[-1]
        wp = jnp.pad(w, ((0, 0), (0, 0), (0, Cp - Cin), (0, 0)))
        return wp.reshape(K * K * Cp, co).T

    w_enc_m = conv_mat(p["w_enc"])                                    # (Ci, 9*Cp)
    w_ss_m = conv_mat(jnp.concatenate([p["w_scl"], p["w_sft"]], -1))  # (2Ci, 9*Cp)
    w_dec_m = p["w_dec"].reshape(K * K * Ci, Cout).T                  # (Cout, 9*Ci)

    b_enc = p["b_enc"].reshape(Ci, 1)
    b_ss = jnp.concatenate([p["b_scl"], p["b_sft"]], -1).reshape(2 * Ci, 1)
    b_dec = p["b_dec"].reshape(Cout, 1)

    def full2d(shape):
        return pl.BlockSpec(shape, lambda b: (0, 0))

    out_flat = pl.pallas_call(
        functools.partial(sft_kernel, H=H, W=W),
        out_shape=jax.ShapeDtypeStruct((N, Cout, HW), jnp.float32),
        grid=(N,),
        in_specs=[
            pl.BlockSpec((1, Cp, HW), lambda b: (b, 0, 0)),
            pl.BlockSpec((1, Cp, HW), lambda b: (b, 0, 0)),
            full2d((Ci, K * K * Cp)), full2d((Ci, 1)),
            full2d((2 * Ci, K * K * Cp)), full2d((2 * Ci, 1)),
            full2d((Cout, K * K * Ci)), full2d((Cout, 1)),
        ],
        out_specs=pl.BlockSpec((1, Cout, HW), lambda b: (b, 0, 0)),
        compiler_params=pltpu.CompilerParams(
            dimension_semantics=("parallel",)),
    )(x_f, g_f, w_enc_m, b_enc, w_ss_m, b_ss, w_dec_m, b_dec)

    return out_flat.reshape(N, Cout, H, W)        # already channels-first


def init_params(key, in_ch=3, inter_ch=32, out_ch=3):
    """Deterministic PyTorch-style uniform init (synthetic weights, HWIO)."""
    ks = jax.random.split(key, 8)

    def conv_init(kw, kb, cin, cout):
        bound = 1.0 / jnp.sqrt(cin * K * K)
        w = jax.random.uniform(kw, (K, K, cin, cout), jnp.float32, -bound, bound)
        b = jax.random.uniform(kb, (1, cout), jnp.float32, -bound, bound)
        return w, b

    w_enc, b_enc = conv_init(ks[0], ks[1], in_ch, inter_ch)
    w_scl, b_scl = conv_init(ks[2], ks[3], in_ch, inter_ch)
    w_sft, b_sft = conv_init(ks[4], ks[5], in_ch, inter_ch)
    w_dec, b_dec = conv_init(ks[6], ks[7], inter_ch, out_ch)
    return dict(w_enc=w_enc, b_enc=b_enc, w_scl=w_scl, b_scl=b_scl,
                w_sft=w_sft, b_sft=b_sft, w_dec=w_dec, b_dec=b_dec)


def sft_layer_reference(x, guide, p):
    """Pure-JAX reference (matches PyTorch NCHW conv semantics)."""
    def conv(inp, w_hwio, b):
        w_oihw = jnp.transpose(w_hwio, (3, 2, 0, 1))
        out = lax.conv_general_dilated(
            inp, w_oihw, window_strides=(1, 1), padding="SAME",
            dimension_numbers=("NCHW", "OIHW", "NCHW"),
            precision=lax.Precision.HIGHEST)
        return out + b.reshape(1, -1, 1, 1)

    enc = conv(x, p["w_enc"], p["b_enc"])          # LeakyReLU(slope=1.0) == id
    scale = conv(guide, p["w_scl"], p["b_scl"])
    shift = conv(guide, p["w_sft"], p["b_sft"])
    h = enc + enc * scale + shift
    return conv(h, p["w_dec"], p["b_dec"])


if __name__ == "__main__":
    key = jax.random.PRNGKey(0)
    k_x, k_g, k_p = jax.random.split(key, 3)

    N, C, H, W = 2, 3, 16, 16                     # in_ch=3, inter_ch=32, out_ch=3
    x = jax.random.normal(k_x, (N, C, H, W), jnp.float32)
    guide = jax.random.normal(k_g, (N, C, H, W), jnp.float32)
    params = init_params(k_p, in_ch=3, inter_ch=32, out_ch=3)

    out = jax.block_until_ready(sft_layer_pallas(x, guide, params))
    ref = jax.block_until_ready(sft_layer_reference(x, guide, params))

    assert out.shape == (N, 3, H, W)
    err = float(jnp.max(jnp.abs(out - ref)))
    assert jnp.allclose(out, ref, atol=1e-3, rtol=1e-3), err
    print("KERNEL_OK")
</pallas_src>

<mosaic_0001>
module attributes {stable_mosaic.version = 11 : i64} {
  func.func @sft_kernel(%arg0: i32, %arg1: memref<1x8x256xf32, #tpu.memory_space<vmem>>, %arg2: memref<1x8x256xf32, #tpu.memory_space<vmem>>, %arg3: memref<32x72xf32, #tpu.memory_space<vmem>>, %arg4: memref<32x1xf32, #tpu.memory_space<vmem>>, %arg5: memref<64x72xf32, #tpu.memory_space<vmem>>, %arg6: memref<64x1xf32, #tpu.memory_space<vmem>>, %arg7: memref<3x288xf32, #tpu.memory_space<vmem>>, %arg8: memref<3x1xf32, #tpu.memory_space<vmem>>, %arg9: memref<1x3x256xf32, #tpu.memory_space<vmem>>) attributes {dimension_semantics = [#tpu.dimension_semantics<parallel>], iteration_bounds = array<i64: 2>, scalar_prefetch = 0 : i64, scratch_operands = 0 : i64, tpu.core_type = #tpu.core_type<tc>, window_params = [{transform_indices = @transform_0, window_bounds = array<i64: 1, 8, 256>}, {transform_indices = @transform_1, window_bounds = array<i64: 1, 8, 256>}, {pipeline_mode = #tpu.pipeline_mode<synchronous>, transform_indices = @transform_2, window_bounds = array<i64: 32, 72>}, {pipeline_mode = #tpu.pipeline_mode<synchronous>, transform_indices = @transform_3, window_bounds = array<i64: 32, 1>}, {pipeline_mode = #tpu.pipeline_mode<synchronous>, transform_indices = @transform_4, window_bounds = array<i64: 64, 72>}, {pipeline_mode = #tpu.pipeline_mode<synchronous>, transform_indices = @transform_5, window_bounds = array<i64: 64, 1>}, {pipeline_mode = #tpu.pipeline_mode<synchronous>, transform_indices = @transform_6, window_bounds = array<i64: 3, 288>}, {pipeline_mode = #tpu.pipeline_mode<synchronous>, transform_indices = @transform_7, window_bounds = array<i64: 3, 1>}, {transform_indices = @transform_8, window_bounds = array<i64: 1, 3, 256>}]} {
    %0 = tpu.iota {dimensions = array<i32: 1>} : vector<1x256xi32>
    %c15_i32 = arith.constant 15 : i32
    %1 = vector.broadcast %c15_i32 : i32 to vector<1x256xi32>
    %2 = arith.andi %0, %1 : vector<1x256xi32>
    %c16_i32 = arith.constant 16 : i32
    %3 = vector.broadcast %c16_i32 : i32 to vector<1x256xi32>
    %4 = arith.cmpi sge, %0, %3 : vector<1x256xi32>
    %cst = arith.constant 1.000000e+00 : f32
    %cst_0 = arith.constant 0.000000e+00 : f32
    %5 = vector.broadcast %cst : f32 to vector<1x256xf32>
    %6 = vector.broadcast %cst_0 : f32 to vector<1x256xf32>
    %7 = arith.select %4, %5, %6 : vector<1x256xi1>, vector<1x256xf32>
    %c240_i32 = arith.constant 240 : i32
    %8 = vector.broadcast %c240_i32 : i32 to vector<1x256xi32>
    %9 = arith.cmpi slt, %0, %8 : vector<1x256xi32>
    %cst_1 = arith.constant 1.000000e+00 : f32
    %cst_2 = arith.constant 0.000000e+00 : f32
    %10 = vector.broadcast %cst_1 : f32 to vector<1x256xf32>
    %11 = vector.broadcast %cst_2 : f32 to vector<1x256xf32>
    %12 = arith.select %9, %10, %11 : vector<1x256xi1>, vector<1x256xf32>
    %c1_i32 = arith.constant 1 : i32
    %13 = vector.broadcast %c1_i32 : i32 to vector<1x256xi32>
    %14 = arith.cmpi sge, %2, %13 : vector<1x256xi32>
    %cst_3 = arith.constant 1.000000e+00 : f32
    %cst_4 = arith.constant 0.000000e+00 : f32
    %15 = vector.broadcast %cst_3 : f32 to vector<1x256xf32>
    %16 = vector.broadcast %cst_4 : f32 to vector<1x256xf32>
    %17 = arith.select %14, %15, %16 : vector<1x256xi1>, vector<1x256xf32>
    %c15_i32_5 = arith.constant 15 : i32
    %18 = vector.broadcast %c15_i32_5 : i32 to vector<1x256xi32>
    %19 = arith.cmpi slt, %2, %18 : vector<1x256xi32>
    %cst_6 = arith.constant 1.000000e+00 : f32
    %cst_7 = arith.constant 0.000000e+00 : f32
    %20 = vector.broadcast %cst_6 : f32 to vector<1x256xf32>
    %21 = vector.broadcast %cst_7 : f32 to vector<1x256xf32>
    %22 = arith.select %19, %20, %21 : vector<1x256xi1>, vector<1x256xf32>
    %c0 = arith.constant 0 : index
    %c0_8 = arith.constant 0 : index
    %c0_9 = arith.constant 0 : index
    %23 = vector.load %arg1[%c0, %c0_8, %c0_9] : memref<1x8x256xf32, #tpu.memory_space<vmem>>, vector<1x8x256xf32>
    %24 = vector.shape_cast %23 : vector<1x8x256xf32> to vector<8x256xf32>
    %c0_10 = arith.constant 0 : index
    %c0_11 = arith.constant 0 : index
    %c0_12 = arith.constant 0 : index
    %25 = vector.load %arg2[%c0_10, %c0_11, %c0_12] : memref<1x8x256xf32, #tpu.memory_space<vmem>>, vector<1x8x256xf32>
    %26 = vector.shape_cast %25 : vector<1x8x256xf32> to vector<8x256xf32>
    %c0_13 = arith.constant 0 : index
    %c0_14 = arith.constant 0 : index
    %27 = vector.load %arg3[%c0_13, %c0_14] : memref<32x72xf32, #tpu.memory_space<vmem>>, vector<32x72xf32>
    %c17_i32 = arith.constant 17 : i32
    %28 = tpu.dynamic_rotate %24 by %c17_i32 dim 1 : vector<8x256xf32>, i32 -> vector<8x256xf32>
    %29 = arith.mulf %7, %17 : vector<1x256xf32>
    %30 = vector.broadcast %29 : vector<1x256xf32> to vector<8x256xf32>
    %31 = arith.mulf %28, %30 : vector<8x256xf32>
    %c16_i32_15 = arith.constant 16 : i32
    %32 = tpu.dynamic_rotate %24 by %c16_i32_15 dim 1 : vector<8x256xf32>, i32 -> vector<8x256xf32>
    %33 = vector.broadcast %7 : vector<1x256xf32> to vector<8x256xf32>
    %34 = arith.mulf %32, %33 : vector<8x256xf32>
    %c15_i32_16 = arith.constant 15 : i32
    %35 = tpu.dynamic_rotate %24 by %c15_i32_16 dim 1 : vector<8x256xf32>, i32 -> vector<8x256xf32>
    %36 = arith.mulf %7, %22 : vector<1x256xf32>
    %37 = vector.broadcast %36 : vector<1x256xf32> to vector<8x256xf32>
    %38 = arith.mulf %35, %37 : vector<8x256xf32>
    %c1_i32_17 = arith.constant 1 : i32
    %39 = tpu.dynamic_rotate %24 by %c1_i32_17 dim 1 : vector<8x256xf32>, i32 -> vector<8x256xf32>
    %40 = vector.broadcast %17 : vector<1x256xf32> to vector<8x256xf32>
    %41 = arith.mulf %39, %40 : vector<8x256xf32>
    %c255_i32 = arith.constant 255 : i32
    %42 = tpu.dynamic_rotate %24 by %c255_i32 dim 1 : vector<8x256xf32>, i32 -> vector<8x256xf32>
    %43 = vector.broadcast %22 : vector<1x256xf32> to vector<8x256xf32>
    %44 = arith.mulf %42, %43 : vector<8x256xf32>
    %c241_i32 = arith.constant 241 : i32
    %45 = tpu.dynamic_rotate %24 by %c241_i32 dim 1 : vector<8x256xf32>, i32 -> vector<8x256xf32>
    %46 = arith.mulf %12, %17 : vector<1x256xf32>
    %47 = vector.broadcast %46 : vector<1x256xf32> to vector<8x256xf32>
    %48 = arith.mulf %45, %47 : vector<8x256xf32>
    %c240_i32_18 = arith.constant 240 : i32
    %49 = tpu.dynamic_rotate %24 by %c240_i32_18 dim 1 : vector<8x256xf32>, i32 -> vector<8x256xf32>
    %50 = vector.broadcast %12 : vector<1x256xf32> to vector<8x256xf32>
    %51 = arith.mulf %49, %50 : vector<8x256xf32>
    %c239_i32 = arith.constant 239 : i32
    %52 = tpu.dynamic_rotate %24 by %c239_i32 dim 1 : vector<8x256xf32>, i32 -> vector<8x256xf32>
    %53 = arith.mulf %12, %22 : vector<1x256xf32>
    %54 = vector.broadcast %53 : vector<1x256xf32> to vector<8x256xf32>
    %55 = arith.mulf %52, %54 : vector<8x256xf32>
    %56 = tpu.concatenate %31, %34, %38, %41, %24, %44, %48, %51, %55 in 0 : vector<8x256xf32>, vector<8x256xf32>, vector<8x256xf32>, vector<8x256xf32>, vector<8x256xf32>, vector<8x256xf32>, vector<8x256xf32>, vector<8x256xf32>, vector<8x256xf32> -> vector<72x256xf32>
    %cst_19 = arith.constant dense<0.000000e+00> : vector<32x256xf32>
    %57 = tpu.matmul %27, %56, %cst_19 {dimension_numbers = #tpu.dot_dimension_numbers<[1], [0], [0], [1], [0, 0, 1, 1], [], []>} : vector<32x72xf32>, vector<72x256xf32>, vector<32x256xf32> -> vector<32x256xf32>
    %c0_20 = arith.constant 0 : index
    %c0_21 = arith.constant 0 : index
    %58 = vector.load %arg4[%c0_20, %c0_21] : memref<32x1xf32, #tpu.memory_space<vmem>>, vector<32x1xf32>
    %59 = vector.broadcast %58 : vector<32x1xf32> to vector<32x256xf32>
    %60 = arith.addf %57, %59 : vector<32x256xf32>
    %c0_22 = arith.constant 0 : index
    %c0_23 = arith.constant 0 : index
    %61 = vector.load %arg5[%c0_22, %c0_23] : memref<64x72xf32, #tpu.memory_space<vmem>>, vector<64x72xf32>
    %c17_i32_24 = arith.constant 17 : i32
    %62 = tpu.dynamic_rotate %26 by %c17_i32_24 dim 1 : vector<8x256xf32>, i32 -> vector<8x256xf32>
    %63 = arith.mulf %7, %17 : vector<1x256xf32>
    %64 = vector.broadcast %63 : vector<1x256xf32> to vector<8x256xf32>
    %65 = arith.mulf %62, %64 : vector<8x256xf32>
    %c16_i32_25 = arith.constant 16 : i32
    %66 = tpu.dynamic_rotate %26 by %c16_i32_25 dim 1 : vector<8x256xf32>, i32 -> vector<8x256xf32>
    %67 = vector.broadcast %7 : vector<1x256xf32> to vector<8x256xf32>
    %68 = arith.mulf %66, %67 : vector<8x256xf32>
    %c15_i32_26 = arith.constant 15 : i32
    %69 = tpu.dynamic_rotate %26 by %c15_i32_26 dim 1 : vector<8x256xf32>, i32 -> vector<8x256xf32>
    %70 = arith.mulf %7, %22 : vector<1x256xf32>
    %71 = vector.broadcast %70 : vector<1x256xf32> to vector<8x256xf32>
    %72 = arith.mulf %69, %71 : vector<8x256xf32>
    %c1_i32_27 = arith.constant 1 : i32
    %73 = tpu.dynamic_rotate %26 by %c1_i32_27 dim 1 : vector<8x256xf32>, i32 -> vector<8x256xf32>
    %74 = vector.broadcast %17 : vector<1x256xf32> to vector<8x256xf32>
    %75 = arith.mulf %73, %74 : vector<8x256xf32>
    %c255_i32_28 = arith.constant 255 : i32
    %76 = tpu.dynamic_rotate %26 by %c255_i32_28 dim 1 : vector<8x256xf32>, i32 -> vector<8x256xf32>
    %77 = vector.broadcast %22 : vector<1x256xf32> to vector<8x256xf32>
    %78 = arith.mulf %76, %77 : vector<8x256xf32>
    %c241_i32_29 = arith.constant 241 : i32
    %79 = tpu.dynamic_rotate %26 by %c241_i32_29 dim 1 : vector<8x256xf32>, i32 -> vector<8x256xf32>
    %80 = arith.mulf %12, %17 : vector<1x256xf32>
    %81 = vector.broadcast %80 : vector<1x256xf32> to vector<8x256xf32>
    %82 = arith.mulf %79, %81 : vector<8x256xf32>
    %c240_i32_30 = arith.constant 240 : i32
    %83 = tpu.dynamic_rotate %26 by %c240_i32_30 dim 1 : vector<8x256xf32>, i32 -> vector<8x256xf32>
    %84 = vector.broadcast %12 : vector<1x256xf32> to vector<8x256xf32>
    %85 = arith.mulf %83, %84 : vector<8x256xf32>
    %c239_i32_31 = arith.constant 239 : i32
    %86 = tpu.dynamic_rotate %26 by %c239_i32_31 dim 1 : vector<8x256xf32>, i32 -> vector<8x256xf32>
    %87 = arith.mulf %12, %22 : vector<1x256xf32>
    %88 = vector.broadcast %87 : vector<1x256xf32> to vector<8x256xf32>
    %89 = arith.mulf %86, %88 : vector<8x256xf32>
    %90 = tpu.concatenate %65, %68, %72, %75, %26, %78, %82, %85, %89 in 0 : vector<8x256xf32>, vector<8x256xf32>, vector<8x256xf32>, vector<8x256xf32>, vector<8x256xf32>, vector<8x256xf32>, vector<8x256xf32>, vector<8x256xf32>, vector<8x256xf32> -> vector<72x256xf32>
    %cst_32 = arith.constant dense<0.000000e+00> : vector<64x256xf32>
    %91 = tpu.matmul %61, %90, %cst_32 {dimension_numbers = #tpu.dot_dimension_numbers<[1], [0], [0], [1], [0, 0, 1, 1], [], []>} : vector<64x72xf32>, vector<72x256xf32>, vector<64x256xf32> -> vector<64x256xf32>
    %c0_33 = arith.constant 0 : index
    %c0_34 = arith.constant 0 : index
    %92 = vector.load %arg6[%c0_33, %c0_34] : memref<64x1xf32, #tpu.memory_space<vmem>>, vector<64x1xf32>
    %93 = vector.broadcast %92 : vector<64x1xf32> to vector<64x256xf32>
    %94 = arith.addf %91, %93 : vector<64x256xf32>
    %95 = vector.extract_strided_slice %94 {offsets = [0, 0], sizes = [32, 256], strides = [1, 1]} : vector<64x256xf32> to vector<32x256xf32>
    %96 = vector.extract_strided_slice %94 {offsets = [32, 0], sizes = [32, 256], strides = [1, 1]} : vector<64x256xf32> to vector<32x256xf32>
    %97 = arith.mulf %60, %95 : vector<32x256xf32>
    %98 = arith.addf %60, %97 : vector<32x256xf32>
    %99 = arith.addf %98, %96 : vector<32x256xf32>
    %c0_35 = arith.constant 0 : index
    %c0_36 = arith.constant 0 : index
    %100 = vector.load %arg7[%c0_35, %c0_36] : memref<3x288xf32, #tpu.memory_space<vmem>>, vector<3x288xf32>
    %c17_i32_37 = arith.constant 17 : i32
    %101 = tpu.dynamic_rotate %99 by %c17_i32_37 dim 1 : vector<32x256xf32>, i32 -> vector<32x256xf32>
    %102 = arith.mulf %7, %17 : vector<1x256xf32>
    %103 = vector.broadcast %102 : vector<1x256xf32> to vector<32x256xf32>
    %104 = arith.mulf %101, %103 : vector<32x256xf32>
    %c16_i32_38 = arith.constant 16 : i32
    %105 = tpu.dynamic_rotate %99 by %c16_i32_38 dim 1 : vector<32x256xf32>, i32 -> vector<32x256xf32>
    %106 = vector.broadcast %7 : vector<1x256xf32> to vector<32x256xf32>
    %107 = arith.mulf %105, %106 : vector<32x256xf32>
    %c15_i32_39 = arith.constant 15 : i32
    %108 = tpu.dynamic_rotate %99 by %c15_i32_39 dim 1 : vector<32x256xf32>, i32 -> vector<32x256xf32>
    %109 = arith.mulf %7, %22 : vector<1x256xf32>
    %110 = vector.broadcast %109 : vector<1x256xf32> to vector<32x256xf32>
    %111 = arith.mulf %108, %110 : vector<32x256xf32>
    %c1_i32_40 = arith.constant 1 : i32
    %112 = tpu.dynamic_rotate %99 by %c1_i32_40 dim 1 : vector<32x256xf32>, i32 -> vector<32x256xf32>
    %113 = vector.broadcast %17 : vector<1x256xf32> to vector<32x256xf32>
    %114 = arith.mulf %112, %113 : vector<32x256xf32>
    %c255_i32_41 = arith.constant 255 : i32
    %115 = tpu.dynamic_rotate %99 by %c255_i32_41 dim 1 : vector<32x256xf32>, i32 -> vector<32x256xf32>
    %116 = vector.broadcast %22 : vector<1x256xf32> to vector<32x256xf32>
    %117 = arith.mulf %115, %116 : vector<32x256xf32>
    %c241_i32_42 = arith.constant 241 : i32
    %118 = tpu.dynamic_rotate %99 by %c241_i32_42 dim 1 : vector<32x256xf32>, i32 -> vector<32x256xf32>
    %119 = arith.mulf %12, %17 : vector<1x256xf32>
    %120 = vector.broadcast %119 : vector<1x256xf32> to vector<32x256xf32>
    %121 = arith.mulf %118, %120 : vector<32x256xf32>
    %c240_i32_43 = arith.constant 240 : i32
    %122 = tpu.dynamic_rotate %99 by %c240_i32_43 dim 1 : vector<32x256xf32>, i32 -> vector<32x256xf32>
    %123 = vector.broadcast %12 : vector<1x256xf32> to vector<32x256xf32>
    %124 = arith.mulf %122, %123 : vector<32x256xf32>
    %c239_i32_44 = arith.constant 239 : i32
    %125 = tpu.dynamic_rotate %99 by %c239_i32_44 dim 1 : vector<32x256xf32>, i32 -> vector<32x256xf32>
    %126 = arith.mulf %12, %22 : vector<1x256xf32>
    %127 = vector.broadcast %126 : vector<1x256xf32> to vector<32x256xf32>
    %128 = arith.mulf %125, %127 : vector<32x256xf32>
    %129 = tpu.concatenate %104, %107, %111, %114, %99, %117, %121, %124, %128 in 0 : vector<32x256xf32>, vector<32x256xf32>, vector<32x256xf32>, vector<32x256xf32>, vector<32x256xf32>, vector<32x256xf32>, vector<32x256xf32>, vector<32x256xf32>, vector<32x256xf32> -> vector<288x256xf32>
    %cst_45 = arith.constant dense<0.000000e+00> : vector<3x256xf32>
    %130 = tpu.matmul %100, %129, %cst_45 {dimension_numbers = #tpu.dot_dimension_numbers<[1], [0], [0], [1], [0, 0, 1, 1], [], []>} : vector<3x288xf32>, vector<288x256xf32>, vector<3x256xf32> -> vector<3x256xf32>
    %c0_46 = arith.constant 0 : index
    %c0_47 = arith.constant 0 : index
    %131 = vector.load %arg8[%c0_46, %c0_47] : memref<3x1xf32, #tpu.memory_space<vmem>>, vector<3x1xf32>
    %132 = vector.broadcast %131 : vector<3x1xf32> to vector<3x256xf32>
    %133 = arith.addf %130, %132 : vector<3x256xf32>
    %c0_48 = arith.constant 0 : index
    %c0_49 = arith.constant 0 : index
    %c0_50 = arith.constant 0 : index
    %134 = vector.load %arg9[%c0_48, %c0_49, %c0_50] : memref<1x3x256xf32, #tpu.memory_space<vmem>>, vector<1x3x256xf32>
    %135 = vector.shape_cast %134 : vector<1x3x256xf32> to vector<3x256xf32>
    %136 = vector.shape_cast %133 : vector<3x256xf32> to vector<1x3x256xf32>
    tpu.vector_store %arg9[%c0_48, %c0_49, %c0_50], %136 {strides = array<i32>} : memref<1x3x256xf32, #tpu.memory_space<vmem>>, vector<1x3x256xf32>,
    return
  }
  func.func @transform_0(%arg0: i32) -> (i32, i32, i32) {
    %c0_i32 = arith.constant 0 : i32
    %c0_i32_0 = arith.constant 0 : i32
    %c0_i32_1 = arith.constant 0 : i32
    return %arg0, %c0_i32, %c0_i32_0 : i32, i32, i32
  }
  func.func @transform_1(%arg0: i32) -> (i32, i32, i32) {
    %c0_i32 = arith.constant 0 : i32
    %c0_i32_0 = arith.constant 0 : i32
    %c0_i32_1 = arith.constant 0 : i32
    return %arg0, %c0_i32, %c0_i32_0 : i32, i32, i32
  }
  func.func @transform_2(%arg0: i32) -> (i32, i32) {
    %c0_i32 = arith.constant 0 : i32
    %c0_i32_0 = arith.constant 0 : i32
    %c0_i32_1 = arith.constant 0 : i32
    return %c0_i32, %c0_i32_0 : i32, i32
  }
  func.func @transform_3(%arg0: i32) -> (i32, i32) {
    %c0_i32 = arith.constant 0 : i32
    %c0_i32_0 = arith.constant 0 : i32
    %c0_i32_1 = arith.constant 0 : i32
    return %c0_i32, %c0_i32_0 : i32, i32
  }
  func.func @transform_4(%arg0: i32) -> (i32, i32) {
    %c0_i32 = arith.constant 0 : i32
    %c0_i32_0 = arith.constant 0 : i32
    %c0_i32_1 = arith.constant 0 : i32
    return %c0_i32, %c0_i32_0 : i32, i32
  }
  func.func @transform_5(%arg0: i32) -> (i32, i32) {
    %c0_i32 = arith.constant 0 : i32
    %c0_i32_0 = arith.constant 0 : i32
    %c0_i32_1 = arith.constant 0 : i32
    return %c0_i32, %c0_i32_0 : i32, i32
  }
  func.func @transform_6(%arg0: i32) -> (i32, i32) {
    %c0_i32 = arith.constant 0 : i32
    %c0_i32_0 = arith.constant 0 : i32
    %c0_i32_1 = arith.constant 0 : i32
    return %c0_i32, %c0_i32_0 : i32, i32
  }
  func.func @transform_7(%arg0: i32) -> (i32, i32) {
    %c0_i32 = arith.constant 0 : i32
    %c0_i32_0 = arith.constant 0 : i32
    %c0_i32_1 = arith.constant 0 : i32
    return %c0_i32, %c0_i32_0 : i32, i32
  }
  func.func @transform_8(%arg0: i32) -> (i32, i32, i32) {
    %c0_i32 = arith.constant 0 : i32
    %c0_i32_0 = arith.constant 0 : i32
    %c0_i32_1 = arith.constant 0 : i32
    return %arg0, %c0_i32, %c0_i32_0 : i32, i32, i32
  }
}

</mosaic_0001>

<llo_original>
// kernel: tpu_custom_call.1
$region0: #{tpu_custom_call.1}
  #allocation0 [shape = 'u32[]', space=smem, size = 0x4, offset = 0x4, fixed_abs, tag = 'smem constant byte address 0x4 - core index']
  #allocation1 [shape = 'u32[144,128]{1,0:T(1,128)}', space=vmem, size = 0x12000, scoped, tag = 'internal scratch']
  %s0 = inlined_call_operand.vmem [shape: f32[2,8,256], index: 0, kind: input, shape index: {}]
  %s1 = inlined_call_operand.hbm [shape: f32[2,8,256], index: 1, kind: input, shape index: {}]
  %s2 = inlined_call_operand.hbm [shape: f32[32,72], index: 2, kind: input, shape index: {}]
  %s3 = inlined_call_operand.vmem [shape: f32[32,1], index: 3, kind: input, shape index: {}]
  %s4 = inlined_call_operand.vmem [shape: f32[64,72], index: 4, kind: input, shape index: {}]
  %s5 = inlined_call_operand.vmem [shape: f32[64,1], index: 5, kind: input, shape index: {}]
  %s6 = inlined_call_operand.vmem [shape: f32[3,288], index: 6, kind: input, shape index: {}]
  %s7 = inlined_call_operand.vmem [shape: f32[3,1], index: 7, kind: input, shape index: {}]
  %s8 = inlined_call_operand.vmem [shape: f32[2,3,256], index: 8, kind: output, shape index: {}]
  %s9 = sld [smem:[#allocation0]]
  $region73: #{tpu_custom_call.1} parent=0
    _
  %s11 = ssub.s32 1, %s9
  %s12 = scalar_select 0, %s11, %s9
  $region1: #{tpu_custom_call.1} parent=0
    #allocation2 [shape = 'u8[16384]{0}', space=vmem, size = 0x4000, scoped, tag = 'input window, operand 1']
    #allocation3 [shape = 's32[2]{0}', space=sflag, size = 0x8, scoped, tag = 'scoped memory for tpu_custom_call.1']
    #allocation4 [shape = 'u8[16384]{0}', space=vmem, size = 0x4000, scoped, tag = 'input window, operand 2, single buffered']
    #allocation5 [shape = 's32[1]{0}', space=sflag, size = 0x4, scoped, tag = 'scoped memory for tpu_custom_call.1']
    %13 = vsyncpa [#allocation3], 0
    %s14 = scalar_lea.sflag [#allocation3], 1
    %15 = vsyncpa %s14, 0
    %16 = vsyncpa [#allocation5], 0
    loop: start=0, step=1, limit=4
    $region2: #{tpu_custom_call.1} parent=1 // loop_pre_header
      _
    $region3: #{tpu_custom_call.1} parent=1 // loop_header
      %s18 = sphi 0, %s22
      %p19 = scmp.ge.s32.totalorder %s18, 4
      %s28 = sphi 0, %s30
      %s31 = sphi 0, %s28
      %s32 = sphi 0, %s31
      %s48 = sphi 0, %s32
      %s54 = sphi 0, %s56
      %s57 = sphi 0, %s54
      %s58 = sphi 0, %s57
      %s74 = sphi 0, %s58
      %s78 = sphi 0, %s78
      %s80 = sphi 0, %s78
      %s81 = sphi 0, %s80
      %s95 = sphi 0, %s81
      %s99 = sphi 0, %s99
      %s101 = sphi 0, %s99
      %s102 = sphi 0, %s101
      %s116 = sphi 0, %s102
      %s120 = sphi 0, %s120
      %s122 = sphi 0, %s120
      %s123 = sphi 0, %s122
      %s137 = sphi 0, %s123
      %s141 = sphi 0, %s141
      %s143 = sphi 0, %s141
      %s144 = sphi 0, %s143
      %s158 = sphi 0, %s144
      %s162 = sphi 0, %s162
      %s164 = sphi 0, %s162
      %s165 = sphi 0, %s164
      %s179 = sphi 0, %s165
      %s183 = sphi 0, %s183
      %s185 = sphi 0, %s183
      %s186 = sphi 0, %s185
      %s200 = sphi 0, %s186
      %s206 = sphi 0, %s208
      %s209 = sphi 0, %s206
      %s210 = sphi 0, %s209
      %s226 = sphi 0, %s210
    $region4: #{tpu_custom_call.1} parent=1 // loop_header_branch
      %21 = sbr.rel (%p19) target = $region8
    $region5: #{tpu_custom_call.1} parent=1 // loop_body
      %s23 = ssub.s32 %s18, 1
      %s24 = ssub.s32 %s18, 2
      %s25 = sadd.s32 %s18, 1
      %s26 = ssub.s32 %s18, %s25
      %p27 = scmp.eq.s32.totalorder %s26, 0
      %s29 = sadd.s32 %s28, 1
      %s30 = scalar_select %p27, %s28, %s29
      %p33 = pneg %p27
      %p34 = scmp.eq.s32.totalorder %s18, 1
      %p35 = por %p33, %p34
      %p36 = scmp.ne.s32.totalorder %s28, %s31
      %p37 = scmp.eq.s32.totalorder %s18, 0
      %p38 = por %p36, %p37
      %p39 = scmp.ne.s32.totalorder %s28, %s31
      %p40 = scmp.eq.s32.totalorder %s23, 1
      %p41 = por %p39, %p40
      %p42 = scmp.ne.s32.totalorder %s31, %s32
      %p43 = scmp.eq.s32.totalorder %s23, 0
      %p44 = por %p42, %p43
      %p45 = scmp.ne.s32.totalorder %s31, %s32
      %p46 = scmp.eq.s32.totalorder %s24, 1
      %p47 = por %p45, %p46
      %p49 = scmp.ne.s32.totalorder %s32, %s48
      %p50 = scmp.eq.s32.totalorder %s24, 0
      %p51 = por %p49, %p50
      %s52 = ssub.s32 %s18, %s25
      %p53 = scmp.eq.s32.totalorder %s52, 0
      %s55 = sadd.s32 %s54, 1
      %s56 = scalar_select %p53, %s54, %s55
      %p59 = pneg %p53
      %p60 = scmp.eq.s32.totalorder %s18, 1
      %p61 = por %p59, %p60
      %p62 = scmp.ne.s32.totalorder %s54, %s57
      %p63 = scmp.eq.s32.totalorder %s18, 0
      %p64 = por %p62, %p63
      %p65 = scmp.ne.s32.totalorder %s54, %s57
      %p66 = scmp.eq.s32.totalorder %s23, 1
      %p67 = por %p65, %p66
      %p68 = scmp.ne.s32.totalorder %s57, %s58
      %p69 = scmp.eq.s32.totalorder %s23, 0
      %p70 = por %p68, %p69
      %p71 = scmp.ne.s32.totalorder %s57, %s58
      %p72 = scmp.eq.s32.totalorder %s24, 1
      %p73 = por %p71, %p72
      %p75 = scmp.ne.s32.totalorder %s58, %s74
      %p76 = scmp.eq.s32.totalorder %s24, 0
      %p77 = por %p75, %p76
      %s79 = sadd.s32 %s78, 1
      %p82 = scmp.eq.s32.totalorder %s18, 1
      %p83 = scmp.ne.s32.totalorder %s78, %s80
      %p84 = scmp.eq.s32.totalorder %s18, 0
      %p85 = por %p83, %p84
      %p86 = scmp.ne.s32.totalorder %s78, %s80
      %p87 = scmp.eq.s32.totalorder %s23, 1
      %p88 = por %p86, %p87
      %p89 = scmp.ne.s32.totalorder %s80, %s81
      %p90 = scmp.eq.s32.totalorder %s23, 0
      %p91 = por %p89, %p90
      %p92 = scmp.ne.s32.totalorder %s80, %s81
      %p93 = scmp.eq.s32.totalorder %s24, 1
      %p94 = por %p92, %p93
      %p96 = scmp.ne.s32.totalorder %s81, %s95
      %p97 = scmp.eq.s32.totalorder %s24, 0
      %p98 = por %p96, %p97
      %s100 = sadd.s32 %s99, 1
      %p103 = scmp.eq.s32.totalorder %s18, 1
      %p104 = scmp.ne.s32.totalorder %s99, %s101
      %p105 = scmp.eq.s32.totalorder %s18, 0
      %p106 = por %p104, %p105
      %p107 = scmp.ne.s32.totalorder %s99, %s101
      %p108 = scmp.eq.s32.totalorder %s23, 1
      %p109 = por %p107, %p108
      %p110 = scmp.ne.s32.totalorder %s101, %s102
      %p111 = scmp.eq.s32.totalorder %s23, 0
      %p112 = por %p110, %p111
      %p113 = scmp.ne.s32.totalorder %s101, %s102
      %p114 = scmp.eq.s32.totalorder %s24, 1
      %p115 = por %p113, %p114
      %p117 = scmp.ne.s32.totalorder %s102, %s116
      %p118 = scmp.eq.s32.totalorder %s24, 0
      %p119 = por %p117, %p118
      %s121 = sadd.s32 %s120, 1
      %p124 = scmp.eq.s32.totalorder %s18, 1
      %p125 = scmp.ne.s32.totalorder %s120, %s122
      %p126 = scmp.eq.s32.totalorder %s18, 0
      %p127 = por %p125, %p126
      %p128 = scmp.ne.s32.totalorder %s120, %s122
      %p129 = scmp.eq.s32.totalorder %s23, 1
      %p130 = por %p128, %p129
      %p131 = scmp.ne.s32.totalorder %s122, %s123
      %p132 = scmp.eq.s32.totalorder %s23, 0
      %p133 = por %p131, %p132
      %p134 = scmp.ne.s32.totalorder %s122, %s123
      %p135 = scmp.eq.s32.totalorder %s24, 1
      %p136 = por %p134, %p135
      %p138 = scmp.ne.s32.totalorder %s123, %s137
      %p139 = scmp.eq.s32.totalorder %s24, 0
      %p140 = por %p138, %p139
      %s142 = sadd.s32 %s141, 1
      %p145 = scmp.eq.s32.totalorder %s18, 1
      %p146 = scmp.ne.s32.totalorder %s141, %s143
      %p147 = scmp.eq.s32.totalorder %s18, 0
      %p148 = por %p146, %p147
      %p149 = scmp.ne.s32.totalorder %s141, %s143
      %p150 = scmp.eq.s32.totalorder %s23, 1
      %p151 = por %p149, %p150
      %p152 = scmp.ne.s32.totalorder %s143, %s144
      %p153 = scmp.eq.s32.totalorder %s23, 0
      %p154 = por %p152, %p153
      %p155 = scmp.ne.s32.totalorder %s143, %s144
      %p156 = scmp.eq.s32.totalorder %s24, 1
      %p157 = por %p155, %p156
      %p159 = scmp.ne.s32.totalorder %s144, %s158
      %p160 = scmp.eq.s32.totalorder %s24, 0
      %p161 = por %p159, %p160
      %s163 = sadd.s32 %s162, 1
      %p166 = scmp.eq.s32.totalorder %s18, 1
      %p167 = scmp.ne.s32.totalorder %s162, %s164
      %p168 = scmp.eq.s32.totalorder %s18, 0
      %p169 = por %p167, %p168
      %p170 = scmp.ne.s32.totalorder %s162, %s164
      %p171 = scmp.eq.s32.totalorder %s23, 1
      %p172 = por %p170, %p171
      %p173 = scmp.ne.s32.totalorder %s164, %s165
      %p174 = scmp.eq.s32.totalorder %s23, 0
      %p175 = por %p173, %p174
      %p176 = scmp.ne.s32.totalorder %s164, %s165
      %p177 = scmp.eq.s32.totalorder %s24, 1
      %p178 = por %p176, %p177
      %p180 = scmp.ne.s32.totalorder %s165, %s179
      %p181 = scmp.eq.s32.totalorder %s24, 0
      %p182 = por %p180, %p181
      %s184 = sadd.s32 %s183, 1
      %p187 = scmp.eq.s32.totalorder %s18, 1
      %p188 = scmp.ne.s32.totalorder %s183, %s185
      %p189 = scmp.eq.s32.totalorder %s18, 0
      %p190 = por %p188, %p189
      %p191 = scmp.ne.s32.totalorder %s183, %s185
      %p192 = scmp.eq.s32.totalorder %s23, 1
      %p193 = por %p191, %p192
      %p194 = scmp.ne.s32.totalorder %s185, %s186
      %p195 = scmp.eq.s32.totalorder %s23, 0
      %p196 = por %p194, %p195
      %p197 = scmp.ne.s32.totalorder %s185, %s186
      %p198 = scmp.eq.s32.totalorder %s24, 1
      %p199 = por %p197, %p198
      %p201 = scmp.ne.s32.totalorder %s186, %s200
      %p202 = scmp.eq.s32.totalorder %s24, 0
      %p203 = por %p201, %p202
      %s204 = ssub.s32 %s18, %s25
      %p205 = scmp.eq.s32.totalorder %s204, 0
      %s207 = sadd.s32 %s206, 1
      %s208 = scalar_select %p205, %s206, %s207
      %p211 = pneg %p205
      %p212 = scmp.eq.s32.totalorder %s18, 1
      %p213 = por %p211, %p212
      %p214 = scmp.ne.s32.totalorder %s206, %s209
      %p215 = scmp.eq.s32.totalorder %s18, 0
      %p216 = por %p214, %p215
      %p217 = scmp.ne.s32.totalorder %s206, %s209
      %p218 = scmp.eq.s32.totalorder %s23, 1
      %p219 = por %p217, %p218
      %p220 = scmp.ne.s32.totalorder %s209, %s210
      %p221 = scmp.eq.s32.totalorder %s23, 0
      %p222 = por %p220, %p221
      %p223 = scmp.ne.s32.totalorder %s209, %s210
      %p224 = scmp.eq.s32.totalorder %s24, 1
      %p225 = por %p223, %p224
      %p227 = scmp.ne.s32.totalorder %s210, %s226
      %p228 = scmp.eq.s32.totalorder %s24, 0
      %p229 = por %p227, %p228
      %p230 = scmp.le.s32.totalorder 1, %s18
      %p231 = scmp.lt.s32.totalorder %s18, 3
      %p232 = pnand %p230, %p231
      %p233 = pneg %p232
      // Predicated region
      $region9: #{tpu_custom_call.1} parent=5 // pred_check
        _
      $region10: #{tpu_custom_call.1} parent=5 // pred_check_branch
        %235 = sbr.rel (%p232) target = $region12
      $region11: #{tpu_custom_call.1} parent=5 // pred_region
        %s236 = ssub.s32 %s18, 1
        // Predicated region
        $region13: #{tpu_custom_call.1} parent=11 // pred_check
          %p237 = pneg %p91
        $region14: #{tpu_custom_call.1} parent=11 // pred_check_branch
          %239 = sbr.rel (%p237) target = $region16
        $region15: #{tpu_custom_call.1} parent=11 // pred_region
          %s241 = ssub.s32 512, 512
          %242 = vsyncadd [#allocation5], %s241
          %s243 = sshll.u32 [#allocation4], 4
          %s244 = int_to_ptr.vmem [resolvable:$true] %s243
          %249 = dma.hbm_to_vmem [thread:$0]  %s2, 512, %s244, [#allocation5], 128, 128, 8
        $region16: #{tpu_custom_call.1} parent=11 // pred_fallthru
          _
        // Predicated region
        $region17: #{tpu_custom_call.1} parent=11 // pred_check
          %p250 = pneg %p112
        $region18: #{tpu_custom_call.1} parent=11 // pred_check_branch
          %252 = sbr.rel (%p250) target = $region20
        $region19: #{tpu_custom_call.1} parent=11 // pred_region
          _
        $region20: #{tpu_custom_call.1} parent=11 // pred_fallthru
          _
        // Predicated region
        $region21: #{tpu_custom_call.1} parent=11 // pred_check
          %p253 = pneg %p133
        $region22: #{tpu_custom_call.1} parent=11 // pred_check_branch
          %255 = sbr.rel (%p253) target = $region24
        $region23: #{tpu_custom_call.1} parent=11 // pred_region
          _
        $region24: #{tpu_custom_call.1} parent=11 // pred_fallthru
          _
        // Predicated region
        $region25: #{tpu_custom_call.1} parent=11 // pred_check
          %p256 = pneg %p154
        $region26: #{tpu_custom_call.1} parent=11 // pred_check_branch
          %258 = sbr.rel (%p256) target = $region28
        $region27: #{tpu_custom_call.1} parent=11 // pred_region
          _
        $region28: #{tpu_custom_call.1} parent=11 // pred_fallthru
          _
        // Predicated region
        $region29: #{tpu_custom_call.1} parent=11 // pred_check
          %p259 = pneg %p175
        $region30: #{tpu_custom_call.1} parent=11 // pred_check_branch
          %261 = sbr.rel (%p259) target = $region32
        $region31: #{tpu_custom_call.1} parent=11 // pred_region
          _
        $region32: #{tpu_custom_call.1} parent=11 // pred_fallthru
          _
        // Predicated region
        $region33: #{tpu_custom_call.1} parent=11 // pred_check
          %p262 = pneg %p196
        $region34: #{tpu_custom_call.1} parent=11 // pred_check_branch
          %264 = sbr.rel (%p262) target = $region36
        $region35: #{tpu_custom_call.1} parent=11 // pred_region
          _
        $region36: #{tpu_custom_call.1} parent=11 // pred_fallthru
          _
      $region12: #{tpu_custom_call.1} parent=5 // pred_fallthru
        _
      %p265 = scmp.lt.s32.totalorder %s18, 2
      // Predicated region
      $region37: #{tpu_custom_call.1} parent=5 // pred_check
        %p266 = pneg %p265
      $region38: #{tpu_custom_call.1} parent=5 // pred_check_branch
        %268 = sbr.rel (%p266) target = $region40
      $region39: #{tpu_custom_call.1} parent=5 // pred_region
        // Predicated region
        $region41: #{tpu_custom_call.1} parent=39 // pred_check
          %p269 = pneg %p38
        $region42: #{tpu_custom_call.1} parent=39 // pred_check_branch
          %271 = sbr.rel (%p269) target = $region44
        $region43: #{tpu_custom_call.1} parent=39 // pred_region
          %p272 = scmp.lt.s32.totalorder %s18, 1
          %s273 = scalar_select %p272, %s18, 1
          %s274 = smul.addr %s273, 2
          %s275 = smul.addr %s274, 8
          %s276 = scalar_lea.vmem %s0, %s275
        $region44: #{tpu_custom_call.1} parent=39 // pred_fallthru
          _
        // Predicated region
        $region45: #{tpu_custom_call.1} parent=39 // pred_check
          %p277 = pneg %p64
        $region46: #{tpu_custom_call.1} parent=39 // pred_check_branch
          %279 = sbr.rel (%p277) target = $region48
        $region47: #{tpu_custom_call.1} parent=39 // pred_region
          %s280 = sand.u32 %s54, 1
          %s281 = scalar_lea.sflag [#allocation3], %s280
          %s282 = sand.u32 %s54, 1
          %s283 = smul.addr %s282, 16
          %s284 = scalar_lea.vmem [#allocation2], %s283
          %s286 = ssub.s32 256, 256
          %287 = vsyncadd %s281, %s286
          %s288 = smul.addr %s18, 2
          %s289 = smul.addr %s288, 128
          %s290 = scalar_lea.hbm %s1, %s289
          %s292 = sshll.u32 %s284, 4
          %s293 = int_to_ptr.vmem [resolvable:$true] %s292
          %295 = dma.hbm_to_vmem [thread:$0]  %s290, 256, %s293, %s281
        $region48: #{tpu_custom_call.1} parent=39 // pred_fallthru
          _
      $region40: #{tpu_custom_call.1} parent=5 // pred_fallthru
        _
      %p296 = scmp.le.s32.totalorder 1, %s18
      %p297 = scmp.lt.s32.totalorder %s18, 3
      %p298 = pnand %p296, %p297
      %p299 = pneg %p298
      // Predicated region
      $region49: #{tpu_custom_call.1} parent=5 // pred_check
        _
      $region50: #{tpu_custom_call.1} parent=5 // pred_check_branch
        %301 = sbr.rel (%p298) target = $region52
      $region51: #{tpu_custom_call.1} parent=5 // pred_region
        %s302 = ssub.s32 %s18, 1
        %s303 = sand.u32 %s57, 1
        %s304 = scalar_lea.sflag [#allocation3], %s303
        %s305 = sand.u32 %s57, 1
        %s306 = smul.addr %s305, 16
        %s307 = scalar_lea.vmem [#allocation2], %s306
        // Predicated region
        $region53: #{tpu_custom_call.1} parent=51 // pred_check
          %p308 = pneg %p70
        $region54: #{tpu_custom_call.1} parent=51 // pred_check_branch
          %310 = sbr.rel (%p308) target = $region56
        $region55: #{tpu_custom_call.1} parent=51 // pred_region
          %311 = dma.done %s304, 256
        $region56: #{tpu_custom_call.1} parent=51 // pred_fallthru
          _
        // Predicated region
        $region57: #{tpu_custom_call.1} parent=51 // pred_check
          %p312 = pneg %p91
        $region58: #{tpu_custom_call.1} parent=51 // pred_check_branch
          %314 = sbr.rel (%p312) target = $region60
        $region59: #{tpu_custom_call.1} parent=51 // pred_region
          %315 = dma.done [#allocation5], 512
        $region60: #{tpu_custom_call.1} parent=51 // pred_fallthru
          _
        %p316 = scmp.lt.s32.totalorder %s23, 1
        %s317 = scalar_select %p316, %s23, 1
        %s318 = smul.addr %s317, 2
        %s319 = smul.addr %s318, 8
        %s320 = scalar_lea.vmem %s0, %s319
        %p321 = pneg %p44
        %p322 = pneg %p41
        %s323 = sand.u32 %s57, 1
        %s324 = scalar_lea.sflag [#allocation3], %s323
        %s325 = sand.u32 %s57, 1
        %s326 = smul.addr %s325, 16
        %s327 = scalar_lea.vmem [#allocation2], %s326
        %p328 = pneg %p70
        %p329 = pneg %p67
        %p330 = pneg %p91
        %p331 = pneg %p88
        %p332 = pneg %p112
        %p333 = pneg %p109
        %p334 = pneg %p133
        %p335 = pneg %p130
        %p336 = pneg %p154
        %p337 = pneg %p151
        %p338 = pneg %p175
        %p339 = pneg %p172
        %p340 = pneg %p196
        %p341 = pneg %p193
        %p342 = pneg %p222
        %p343 = pneg %p219
        %p344 = scmp.lt.s32.totalorder %s23, 1
        %s345 = scalar_select %p344, %s23, 1
        %s346 = smul.addr %s345, 2
        %s347 = smul.addr %s346, 4
        %s348 = scalar_lea.vmem %s8, %s347
        %p349 = scmp.lt.s32.totalorder %s23, 1
        %s350 = scalar_select %p349, %s23, 1
        %s351 = smul.addr %s350, 2
        %s352 = smul.addr %s351, 8
        %s353 = scalar_lea.vmem %s0, %s352
        %p354 = scmp.lt.s32.totalorder %s23, 1
        %s355 = scalar_select %p354, %s23, 1
        %s356 = smul.addr %s355, 2
        %s357 = smul.addr %s356, 4
        %s358 = scalar_lea.vmem %s8, %s357
        %v359 = vlaneseq
        %v360 = vand.u32 %v359, 127
        %v361 = vadd.s32 %v360, 128
        %v362 = vand.u32 %v360, 15
        %v363 = vand.u32 %v361, 15
        %vm364 = vcmp.ge.s32.totalorder %v360, 16
        %vm365 = vcmp.ge.s32.totalorder %v361, 16
        %v366 = vsel %vm364, 1.0, 0.0
        %v367 = vsel %vm365, 1.0, 0.0
        %vm368 = vcmp.lt.s32.totalorder %v360, 240
        %vm369 = vcmp.lt.s32.totalorder %v361, 240
        %v370 = vsel %vm368, 1.0, 0.0
        %v371 = vsel %vm369, 1.0, 0.0
        %vm372 = vcmp.ge.s32.totalorder %v362, 1
        %vm373 = vcmp.ge.s32.totalorder %v363, 1
        %v374 = vsel %vm372, 1.0, 0.0
        %v375 = vsel %vm373, 1.0, 0.0
        %vm376 = vcmp.lt.s32.totalorder %v362, 15
        %vm377 = vcmp.lt.s32.totalorder %v363, 15
        %v378 = vsel %vm376, 1.0, 0.0
        %v379 = vsel %vm377, 1.0, 0.0
        %v380 = vld [vmem:[%s353] sm:$0xff]
        %v381 = vld [vmem:[%s353 + $0x8] sm:$0xff]
        %v382 = vld [vmem:[%s307] sm:$0xff]
        %v383 = vld [vmem:[%s307 + $0x8] sm:$0xff]
        %v384 = vld [vmem:[#allocation4] sm:$0xff]
        %v385 = vld [vmem:[#allocation4 + $0x8] sm:$0xff]
        %v386 = vld [vmem:[#allocation4 + $0x10] sm:$0xff]
        %v387 = vld [vmem:[#allocation4 + $0x18] sm:$0xff]
        %388 = vrot.lane.b32.xlu0 %v380, 17
        %v389 = vpop.permute.xlu0 %388
        %390 = vrot.lane.b32.xlu0 %v381, 17
        %v391 = vpop.permute.xlu0 %390
        %vm392 = vcmp.lt.s32.totalorder %v360, 17
        %v393 = vsel %vm392, %v389, %v391
        %v394 = vsel %vm392, %v391, %v389
        %v395 = vmul.f32 %v366, %v374
        %v396 = vmul.f32 %v367, %v375
        %v397 = vmul.f32 %v394, %v395
        %v398 = vmul.f32 %v393, %v396
        %399 = vrot.lane.b32.xlu0 %v380, 16
        %v400 = vpop.permute.xlu0 %399
        %401 = vrot.lane.b32.xlu0 %v381, 16
        %v402 = vpop.permute.xlu0 %401
        %vm403 = vcmp.lt.s32.totalorder %v360, 16
        %v404 = vsel %vm403, %v400, %v402
        %v405 = vsel %vm403, %v402, %v400
        %v406 = vmul.f32 %v405, %v366
        %v407 = vmul.f32 %v404, %v367
        %408 = vrot.lane.b32.xlu0 %v380, 15
        %v409 = vpop.permute.xlu0 %408
        %410 = vrot.lane.b32.xlu0 %v381, 15
        %v411 = vpop.permute.xlu0 %410
        %vm412 = vcmp.lt.s32.totalorder %v360, 15
        %v413 = vsel %vm412, %v409, %v411
        %v414 = vsel %vm412, %v411, %v409
        %v415 = vmul.f32 %v366, %v378
        %v416 = vmul.f32 %v367, %v379
        %v417 = vmul.f32 %v414, %v415
        %v418 = vmul.f32 %v413, %v416
        %419 = vrot.lane.b32.xlu0 %v380, 1
        %v420 = vpop.permute.xlu0 %419
        %421 = vrot.lane.b32.xlu0 %v381, 1
        %v422 = vpop.permute.xlu0 %421
        %vm423 = vcmp.lt.s32.totalorder %v360, 1
        %v424 = vsel %vm423, %v420, %v422
        %v425 = vsel %vm423, %v422, %v420
        %v426 = vmul.f32 %v425, %v374
        %v427 = vmul.f32 %v424, %v375
        %428 = vrot.lane.b32.xlu0 %v380, 127
        %v429 = vpop.permute.xlu0 %428
        %430 = vrot.lane.b32.xlu0 %v381, 127
        %v431 = vpop.permute.xlu0 %430
        %vm432 = vcmp.lt.s32.totalorder %v360, 127
        %v433 = vsel %vm432, %v429, %v431
        %v434 = vsel %vm432, %v431, %v429
        %v435 = vmul.f32 %v433, %v378
        %v436 = vmul.f32 %v434, %v379
        %437 = vrot.lane.b32.xlu0 %v380, 113
        %v438 = vpop.permute.xlu0 %437
        %439 = vrot.lane.b32.xlu0 %v381, 113
        %v440 = vpop.permute.xlu0 %439
        %vm441 = vcmp.lt.s32.totalorder %v360, 113
        %v442 = vsel %vm441, %v438, %v440
        %v443 = vsel %vm441, %v440, %v438
        %v444 = vmul.f32 %v370, %v374
        %v445 = vmul.f32 %v371, %v375
        %v446 = vmul.f32 %v442, %v444
        %v447 = vmul.f32 %v443, %v445
        %448 = vrot.lane.b32.xlu0 %v380, 112
        %v449 = vpop.permute.xlu0 %448
        %450 = vrot.lane.b32.xlu0 %v381, 112
        %v451 = vpop.permute.xlu0 %450
        %vm452 = vcmp.lt.s32.totalorder %v360, 112
        %v453 = vsel %vm452, %v449, %v451
        %v454 = vsel %vm452, %v451, %v449
        %v455 = vmul.f32 %v453, %v370
        %v456 = vmul.f32 %v454, %v371
        %457 = vrot.lane.b32.xlu0 %v380, 111
        %v458 = vpop.permute.xlu0 %457
        %459 = vrot.lane.b32.xlu0 %v381, 111
        %v460 = vpop.permute.xlu0 %459
        %vm461 = vcmp.lt.s32.totalorder %v360, 111
        %v462 = vsel %vm461, %v458, %v460
        %v463 = vsel %vm461, %v460, %v458
        %v464 = vmul.f32 %v370, %v378
        %v465 = vmul.f32 %v371, %v379
        %v466 = vmul.f32 %v462, %v464
        %v467 = vmul.f32 %v463, %v465
        %v468 = vld [vmem:[%s3] sm:$0xff]
        %v469 = vld [vmem:[%s3 + $0x8] sm:$0xff]
        %v470 = vld [vmem:[%s3 + $0x10] sm:$0xff]
        %v471 = vld [vmem:[%s3 + $0x18] sm:$0xff]
        %473 = vset.pattern.permute.xlu0 0
        %474 = vperm.xlu0 %473, %v468
        %v475 = vpop.permute.xlu0 %474
        %478 = vset.pattern.permute.xlu0 0
        %479 = vperm.xlu0 %478, %v469
        %v480 = vpop.permute.xlu0 %479
        %483 = vset.pattern.permute.xlu0 0
        %484 = vperm.xlu0 %483, %v470
        %v485 = vpop.permute.xlu0 %484
        %488 = vset.pattern.permute.xlu0 0
        %489 = vperm.xlu0 %488, %v471
        %v490 = vpop.permute.xlu0 %489
        %vm492 = vcmask 588800
        %v494 = vsel %vm492, %v384, 0
        %v497 = vsel %vm492, %v385, 0
        %v500 = vsel %vm492, %v386, 0
        %v503 = vsel %vm492, %v387, 0
        %505 = vmatprep.subr.mxu0 %v398
        %506 = vmatpush1.msra.mxu0 %v397
        %507 = vmatprep.subr.mxu0 %v407
        %508 = vmatpush1.msra.mxu0 %v406
        %509 = vmatprep.subr.mxu0 %v418
        %510 = vmatpush1.msra.mxu0 %v417
        %511 = vmatprep.subr.mxu0 %v427
        %512 = vmatpush1.msra.mxu0 %v426
        %513 = vmatprep.subr.mxu0 %v381
        %514 = vmatpush1.msra.mxu0 %v380
        %515 = vmatprep.subr.mxu0 %v436
        %516 = vmatpush1.msra.mxu0 %v435
        %517 = vmatprep.subr.mxu0 %v447
        %518 = vmatpush1.msra.mxu0 %v446
        %519 = vmatprep.subr.mxu0 %v456
        %520 = vmatpush1.msra.mxu0 %v455
        %521 = vmatprep.subr.mxu0 %v467
        %522 = vmatpush1.msra.mxu0 %v466
        %523 = vmatprep.subr.mxu0 0.0
        %524 = vmatpush1.msra.mxu0 0.0
        %525 = vmatprep.subr.mxu0 0.0
        %526 = vmatpush1.msra.mxu0 0.0
        %527 = vmatprep.subr.mxu0 0.0
        %528 = vmatpush1.msra.mxu0 0.0
        %529 = vmatprep.subr.mxu0 0.0
        %530 = vmatpush1.msra.mxu0 0.0
        %531 = vmatprep.subr.mxu0 0.0
        %532 = vmatpush1.msra.mxu0 0.0
        %533 = vmatprep.subr.mxu0 0.0
        %534 = vmatpush1.msra.mxu0 0.0
        %535 = vmatprep.subr.mxu0 0.0
        %536 = vmatpush1.msra.mxu0 0.0
        %537 = vmatprep.subr.mxu0 0.0
        %538 = vmatpush1.msra.mxu0 0.0
        %539 = vmatprep.subr.mxu0 0.0
        %540 = vmatpush1.msra.mxu0 0.0
        %541 = vmatprep.subr.mxu0 0.0
        %542 = vmatpush1.msra.mxu0 0.0
        %543 = vmatprep.subr.mxu0 0.0
        %544 = vmatpush1.msra.mxu0 0.0
        %545 = vmatprep.subr.mxu0 0.0
        %546 = vmatpush1.msra.mxu0 0.0
        %547 = vmatprep.subr.mxu0 0.0
        %548 = vmatpush1.msra.mxu0 0.0
        %549 = vmatprep.subr.mxu0 0.0
        %550 = vmatpush1.msra.mxu0 0.0
        %551 = vmatprep.subr.mxu0 0.0
        %552 = vmatpush1.msra.mxu0 0.0
        %553 = vmatprep.subr.mxu0 0.0
        %554 = vmatpush1.msra.mxu0 0.0
        %555 = vmatprep.subr.mxu0 0.0
        %556 = vmatpush1.msra.mxu0 0.0
        %557 = vmatprep.subr.mxu0 0.0
        %558 = vmatpush1.msra.mxu0 0.0
        %559 = vmatprep.subr.mxu0 0.0
        %560 = vmatpush1.msra.mxu0 0.0
        %561 = vmatprep.subr.mxu0 0.0
        %562 = vmatpush1.msra.mxu0 0.0
        %563 = vmatprep.subr.mxu0 0.0
        %564 = vmatpush1.msra.mxu0 0.0
        %565 = vmatprep.subr.mxu0 0.0
        %566 = vmatpush1.msra.mxu0 0.0
        %567 = vmatprep.subr.mxu0 0.0
        %568 = vmatpush1.msra.mxu0 0.0
        %569 = vmatprep.mubr.f32.mxu0 0.0
        %570 = vmatmul.mubr.f32.gmra.mrb[0].mxu0 %v494
        %v571 = vpop.f32.mrb[0].mxu0
        %v572 = vadd.f32 %v475, %v571
        %v573 = vpop.f32.mrb[0].mxu0
        %v574 = vadd.f32 %v475, %v573
        %575 = vmatprep.mubr.f32.mxu0 0.0
        %576 = vmatmul.mubr.f32.gmra.mrb[0].mxu0 %v497
        %v577 = vpop.f32.mrb[0].mxu0
        %v578 = vadd.f32 %v480, %v577
        %v579 = vpop.f32.mrb[0].mxu0
        %v580 = vadd.f32 %v480, %v579
        %581 = vmatprep.mubr.f32.mxu0 0.0
        %582 = vmatmul.mubr.f32.gmra.mrb[0].mxu0 %v500
        %v583 = vpop.f32.mrb[0].mxu0
        %v584 = vadd.f32 %v485, %v583
        %v585 = vpop.f32.mrb[0].mxu0
        %v586 = vadd.f32 %v485, %v585
        %587 = vmatprep.mubr.f32.mxu0 0.0
        %588 = vmatmul.mubr.f32.gmra.mrb[0].mxu0 %v503
        %v589 = vpop.f32.mrb[0].mxu0
        %v590 = vadd.f32 %v490, %v589
        %v591 = vpop.f32.mrb[0].mxu0
        %v592 = vadd.f32 %v490, %v591
        %593 = vdwg.mxu0
        %v594 = vld [vmem:[%s4] sm:$0xff]
        %v595 = vld [vmem:[%s4 + $0x8] sm:$0xff]
        %v596 = vld [vmem:[%s4 + $0x10] sm:$0xff]
        %v597 = vld [vmem:[%s4 + $0x18] sm:$0xff]
        %v598 = vld [vmem:[%s4 + $0x20] sm:$0xff]
        %v599 = vld [vmem:[%s4 + $0x28] sm:$0xff]
        %v600 = vld [vmem:[%s4 + $0x30] sm:$0xff]
        %v601 = vld [vmem:[%s4 + $0x38] sm:$0xff]
        %602 = vrot.lane.b32.xlu0 %v382, 17
        %v603 = vpop.permute.xlu0 %602
        %604 = vrot.lane.b32.xlu0 %v383, 17
        %v605 = vpop.permute.xlu0 %604
        %v606 = vsel %vm392, %v603, %v605
        %v607 = vsel %vm392, %v605, %v603
        %v608 = vmul.f32 %v607, %v395
        %v609 = vmul.f32 %v606, %v396
        %610 = vrot.lane.b32.xlu0 %v382, 16
        %v611 = vpop.permute.xlu0 %610
        %612 = vrot.lane.b32.xlu0 %v383, 16
        %v613 = vpop.permute.xlu0 %612
        %v614 = vsel %vm403, %v611, %v613
        %v615 = vsel %vm403, %v613, %v611
        %v616 = vmul.f32 %v615, %v366
        %v617 = vmul.f32 %v614, %v367
        %618 = vrot.lane.b32.xlu0 %v382, 15
        %v619 = vpop.permute.xlu0 %618
        %620 = vrot.lane.b32.xlu0 %v383, 15
        %v621 = vpop.permute.xlu0 %620
        %v622 = vsel %vm412, %v619, %v621
        %v623 = vsel %vm412, %v621, %v619
        %v624 = vmul.f32 %v623, %v415
        %v625 = vmul.f32 %v622, %v416
        %626 = vrot.lane.b32.xlu0 %v382, 1
        %v627 = vpop.permute.xlu0 %626
        %628 = vrot.lane.b32.xlu0 %v383, 1
        %v629 = vpop.permute.xlu0 %628
        %v630 = vsel %vm423, %v627, %v629
        %v631 = vsel %vm423, %v629, %v627
        %v632 = vmul.f32 %v631, %v374
        %v633 = vmul.f32 %v630, %v375
        %634 = vrot.lane.b32.xlu0 %v382, 127
        %v635 = vpop.permute.xlu0 %634
        %636 = vrot.lane.b32.xlu0 %v383, 127
        %v637 = vpop.permute.xlu0 %636
        %v638 = vsel %vm432, %v635, %v637
        %v639 = vsel %vm432, %v637, %v635
        %v640 = vmul.f32 %v638, %v378
        %v641 = vmul.f32 %v639, %v379
        %642 = vrot.lane.b32.xlu0 %v382, 113
        %v643 = vpop.permute.xlu0 %642
        %644 = vrot.lane.b32.xlu0 %v383, 113
        %v645 = vpop.permute.xlu0 %644
        %v646 = vsel %vm441, %v643, %v645
        %v647 = vsel %vm441, %v645, %v643
        %v648 = vmul.f32 %v646, %v444
        %v649 = vmul.f32 %v647, %v445
        %650 = vrot.lane.b32.xlu0 %v382, 112
        %v651 = vpop.permute.xlu0 %650
        %652 = vrot.lane.b32.xlu0 %v383, 112
        %v653 = vpop.permute.xlu0 %652
        %v654 = vsel %vm452, %v651, %v653
        %v655 = vsel %vm452, %v653, %v651
        %v656 = vmul.f32 %v654, %v370
        %v657 = vmul.f32 %v655, %v371
        %658 = vrot.lane.b32.xlu0 %v382, 111
        %v659 = vpop.permute.xlu0 %658
        %660 = vrot.lane.b32.xlu0 %v383, 111
        %v661 = vpop.permute.xlu0 %660
        %v662 = vsel %vm461, %v659, %v661
        %v663 = vsel %vm461, %v661, %v659
        %v664 = vmul.f32 %v662, %v464
        %v665 = vmul.f32 %v663, %v465
        %v666 = vld [vmem:[%s5] sm:$0xff]
        %v667 = vld [vmem:[%s5 + $0x8] sm:$0xff]
        %v668 = vld [vmem:[%s5 + $0x10] sm:$0xff]
        %v669 = vld [vmem:[%s5 + $0x18] sm:$0xff]
        %v670 = vld [vmem:[%s5 + $0x20] sm:$0xff]
        %v671 = vld [vmem:[%s5 + $0x28] sm:$0xff]
        %v672 = vld [vmem:[%s5 + $0x30] sm:$0xff]
        %v673 = vld [vmem:[%s5 + $0x38] sm:$0xff]
        %675 = vset.pattern.permute.xlu0 0
        %676 = vperm.xlu0 %675, %v666
        %v677 = vpop.permute.xlu0 %676
        %680 = vset.pattern.permute.xlu0 0
        %681 = vperm.xlu0 %680, %v667
        %v682 = vpop.permute.xlu0 %681
        %685 = vset.pattern.permute.xlu0 0
        %686 = vperm.xlu0 %685, %v668
        %v687 = vpop.permute.xlu0 %686
        %690 = vset.pattern.permute.xlu0 0
        %691 = vperm.xlu0 %690, %v669
        %v692 = vpop.permute.xlu0 %691
        %695 = vset.pattern.permute.xlu0 0
        %696 = vperm.xlu0 %695, %v670
        %v697 = vpop.permute.xlu0 %696
        %700 = vset.pattern.permute.xlu0 0
        %701 = vperm.xlu0 %700, %v671
        %v702 = vpop.permute.xlu0 %701
        %705 = vset.pattern.permute.xlu0 0
        %706 = vperm.xlu0 %705, %v672
        %v707 = vpop.permute.xlu0 %706
        %710 = vset.pattern.permute.xlu0 0
        %711 = vperm.xlu0 %710, %v673
        %v712 = vpop.permute.xlu0 %711
        %v715 = vsel %vm492, %v594, 0
        %v718 = vsel %vm492, %v595, 0
        %v721 = vsel %vm492, %v596, 0
        %v724 = vsel %vm492, %v597, 0
        %v727 = vsel %vm492, %v598, 0
        %v730 = vsel %vm492, %v599, 0
        %v733 = vsel %vm492, %v600, 0
        %v736 = vsel %vm492, %v601, 0
        %738 = vmatprep.subr.mxu0 %v609
        %739 = vmatpush1.msra.mxu0 %v608
        %740 = vmatprep.subr.mxu0 %v617
        %741 = vmatpush1.msra.mxu0 %v616
        %742 = vmatprep.subr.mxu0 %v625
        %743 = vmatpush1.msra.mxu0 %v624
        %744 = vmatprep.subr.mxu0 %v633
        %745 = vmatpush1.msra.mxu0 %v632
        %746 = vmatprep.subr.mxu0 %v383
        %747 = vmatpush1.msra.mxu0 %v382
        %748 = vmatprep.subr.mxu0 %v641
        %749 = vmatpush1.msra.mxu0 %v640
        %750 = vmatprep.subr.mxu0 %v649
        %751 = vmatpush1.msra.mxu0 %v648
        %752 = vmatprep.subr.mxu0 %v657
        %753 = vmatpush1.msra.mxu0 %v656
        %754 = vmatprep.subr.mxu0 %v665
        %755 = vmatpush1.msra.mxu0 %v664
        %756 = vmatprep.subr.mxu0 0.0
        %757 = vmatpush1.msra.mxu0 0.0
        %758 = vmatprep.subr.mxu0 0.0
        %759 = vmatpush1.msra.mxu0 0.0
        %760 = vmatprep.subr.mxu0 0.0
        %761 = vmatpush1.msra.mxu0 0.0
        %762 = vmatprep.subr.mxu0 0.0
        %763 = vmatpush1.msra.mxu0 0.0
        %764 = vmatprep.subr.mxu0 0.0
        %765 = vmatpush1.msra.mxu0 0.0
        %766 = vmatprep.subr.mxu0 0.0
        %767 = vmatpush1.msra.mxu0 0.0
        %768 = vmatprep.subr.mxu0 0.0
        %769 = vmatpush1.msra.mxu0 0.0
        %770 = vmatprep.subr.mxu0 0.0
        %771 = vmatpush1.msra.mxu0 0.0
        %772 = vmatprep.subr.mxu0 0.0
        %773 = vmatpush1.msra.mxu0 0.0
        %774 = vmatprep.subr.mxu0 0.0
        %775 = vmatpush1.msra.mxu0 0.0
        %776 = vmatprep.subr.mxu0 0.0
        %777 = vmatpush1.msra.mxu0 0.0
        %778 = vmatprep.subr.mxu0 0.0
        %779 = vmatpush1.msra.mxu0 0.0
        %780 = vmatprep.subr.mxu0 0.0
        %781 = vmatpush1.msra.mxu0 0.0
        %782 = vmatprep.subr.mxu0 0.0
        %783 = vmatpush1.msra.mxu0 0.0
        %784 = vmatprep.subr.mxu0 0.0
        %785 = vmatpush1.msra.mxu0 0.0
        %786 = vmatprep.subr.mxu0 0.0
        %787 = vmatpush1.msra.mxu0 0.0
        %788 = vmatprep.subr.mxu0 0.0
        %789 = vmatpush1.msra.mxu0 0.0
        %790 = vmatprep.subr.mxu0 0.0
        %791 = vmatpush1.msra.mxu0 0.0
        %792 = vmatprep.subr.mxu0 0.0
        %793 = vmatpush1.msra.mxu0 0.0
        %794 = vmatprep.subr.mxu0 0.0
        %795 = vmatpush1.msra.mxu0 0.0
        %796 = vmatprep.subr.mxu0 0.0
        %797 = vmatpush1.msra.mxu0 0.0
        %798 = vmatprep.subr.mxu0 0.0
        %799 = vmatpush1.msra.mxu0 0.0
        %800 = vmatprep.subr.mxu0 0.0
        %801 = vmatpush1.msra.mxu0 0.0
        %802 = vmatprep.mubr.f32.mxu0 0.0
        %803 = vmatmul.mubr.f32.gmra.mrb[0].mxu0 %v715
        %v804 = vpop.f32.mrb[0].mxu0
        %v805 = vadd.f32 %v677, %v804
        %v806 = vpop.f32.mrb[0].mxu0
        %v807 = vadd.f32 %v677, %v806
        %808 = vmatprep.mubr.f32.mxu0 0.0
        %809 = vmatmul.mubr.f32.gmra.mrb[0].mxu0 %v718
        %v810 = vpop.f32.mrb[0].mxu0
        %v811 = vadd.f32 %v682, %v810
        %v812 = vpop.f32.mrb[0].mxu0
        %v813 = vadd.f32 %v682, %v812
        %814 = vmatprep.mubr.f32.mxu0 0.0
        %815 = vmatmul.mubr.f32.gmra.mrb[0].mxu0 %v721
        %v816 = vpop.f32.mrb[0].mxu0
        %v817 = vadd.f32 %v687, %v816
        %v818 = vpop.f32.mrb[0].mxu0
        %v819 = vadd.f32 %v687, %v818
        %820 = vmatprep.mubr.f32.mxu0 0.0
        %821 = vmatmul.mubr.f32.gmra.mrb[0].mxu0 %v724
        %v822 = vpop.f32.mrb[0].mxu0
        %v823 = vadd.f32 %v692, %v822
        %v824 = vpop.f32.mrb[0].mxu0
        %v825 = vadd.f32 %v692, %v824
        %826 = vmatprep.mubr.f32.mxu0 0.0
        %827 = vmatmul.mubr.f32.gmra.mrb[0].mxu0 %v727
        %v828 = vpop.f32.mrb[0].mxu0
        %v829 = vadd.f32 %v697, %v828
        %v830 = vpop.f32.mrb[0].mxu0
        %v831 = vadd.f32 %v697, %v830
        %832 = vmatprep.mubr.f32.mxu0 0.0
        %833 = vmatmul.mubr.f32.gmra.mrb[0].mxu0 %v730
        %v834 = vpop.f32.mrb[0].mxu0
        %v835 = vadd.f32 %v702, %v834
        %v836 = vpop.f32.mrb[0].mxu0
        %v837 = vadd.f32 %v702, %v836
        %838 = vmatprep.mubr.f32.mxu0 0.0
        %839 = vmatmul.mubr.f32.gmra.mrb[0].mxu0 %v733
        %v840 = vpop.f32.mrb[0].mxu0
        %v841 = vadd.f32 %v707, %v840
        %v842 = vpop.f32.mrb[0].mxu0
        %v843 = vadd.f32 %v707, %v842
        %844 = vmatprep.mubr.f32.mxu0 0.0
        %845 = vmatmul.mubr.f32.gmra.mrb[0].mxu0 %v736
        %v846 = vpop.f32.mrb[0].mxu0
        %v847 = vadd.f32 %v712, %v846
        %v848 = vpop.f32.mrb[0].mxu0
        %v849 = vadd.f32 %v712, %v848
        %850 = vdwg.mxu0
        %v851 = vmul.f32 %v572, %v805
        %v852 = vmul.f32 %v574, %v807
        %v853 = vmul.f32 %v578, %v811
        %v854 = vmul.f32 %v580, %v813
        %v855 = vmul.f32 %v584, %v817
        %v856 = vmul.f32 %v586, %v819
        %v857 = vmul.f32 %v590, %v823
        %v858 = vmul.f32 %v592, %v825
        %v859 = vadd.f32 %v572, %v851
        %v860 = vadd.f32 %v574, %v852
        %v861 = vadd.f32 %v578, %v853
        %v862 = vadd.f32 %v580, %v854
        %v863 = vadd.f32 %v584, %v855
        %v864 = vadd.f32 %v586, %v856
        %v865 = vadd.f32 %v590, %v857
        %v866 = vadd.f32 %v592, %v858
        %v867 = vadd.f32 %v859, %v829
        %v868 = vadd.f32 %v860, %v831
        %v869 = vadd.f32 %v861, %v835
        %v870 = vadd.f32 %v862, %v837
        %v871 = vadd.f32 %v863, %v841
        %v872 = vadd.f32 %v864, %v843
        %v873 = vadd.f32 %v865, %v847
        %v874 = vadd.f32 %v866, %v849
        %v875 = vld [vmem:[%s6] sm:$0x77]
        %v876 = vld [vmem:[%s6 + $0x8] sm:$0x7]
        %877 = vrot.lane.b32.xlu0 %v867, 17
        %v878 = vpop.permute.xlu0 %877
        %879 = vrot.lane.b32.xlu0 %v869, 17
        %v880 = vpop.permute.xlu0 %879
        %881 = vrot.lane.b32.xlu0 %v871, 17
        %v882 = vpop.permute.xlu0 %881
        %883 = vrot.lane.b32.xlu0 %v873, 17
        %v884 = vpop.permute.xlu0 %883
        %885 = vrot.lane.b32.xlu0 %v868, 17
        %v886 = vpop.permute.xlu0 %885
        %887 = vrot.lane.b32.xlu0 %v870, 17
        %v888 = vpop.permute.xlu0 %887
        %889 = vrot.lane.b32.xlu0 %v872, 17
        %v890 = vpop.permute.xlu0 %889
        %891 = vrot.lane.b32.xlu0 %v874, 17
        %v892 = vpop.permute.xlu0 %891
        %v893 = vsel %vm392, %v878, %v886
        %v894 = vsel %vm392, %v880, %v888
        %v895 = vsel %vm392, %v882, %v890
        %v896 = vsel %vm392, %v884, %v892
        %v897 = vsel %vm392, %v886, %v878
        %v898 = vsel %vm392, %v888, %v880
        %v899 = vsel %vm392, %v890, %v882
        %v900 = vsel %vm392, %v892, %v884
        %v901 = vmul.f32 %v897, %v395
        %v902 = vmul.f32 %v893, %v396
        %v903 = vmul.f32 %v898, %v395
        %v904 = vmul.f32 %v894, %v396
        %v905 = vmul.f32 %v899, %v395
        %v906 = vmul.f32 %v895, %v396
        %v907 = vmul.f32 %v900, %v395
        %v908 = vmul.f32 %v896, %v396
        %909 = vrot.lane.b32.xlu0 %v867, 16
        %v910 = vpop.permute.xlu0 %909
        %911 = vrot.lane.b32.xlu0 %v869, 16
        %v912 = vpop.permute.xlu0 %911
        %913 = vrot.lane.b32.xlu0 %v871, 16
        %v914 = vpop.permute.xlu0 %913
        %915 = vrot.lane.b32.xlu0 %v873, 16
        %v916 = vpop.permute.xlu0 %915
        %917 = vrot.lane.b32.xlu0 %v868, 16
        %v918 = vpop.permute.xlu0 %917
        %919 = vrot.lane.b32.xlu0 %v870, 16
        %v920 = vpop.permute.xlu0 %919
        %921 = vrot.lane.b32.xlu0 %v872, 16
        %v922 = vpop.permute.xlu0 %921
        %923 = vrot.lane.b32.xlu0 %v874, 16
        %v924 = vpop.permute.xlu0 %923
        %v925 = vsel %vm403, %v910, %v918
        %v926 = vsel %vm403, %v912, %v920
        %v927 = vsel %vm403, %v914, %v922
        %v928 = vsel %vm403, %v916, %v924
        %v929 = vsel %vm403, %v918, %v910
        %v930 = vsel %vm403, %v920, %v912
        %v931 = vsel %vm403, %v922, %v914
        %v932 = vsel %vm403, %v924, %v916
        %v933 = vmul.f32 %v929, %v366
        %v934 = vmul.f32 %v925, %v367
        %v935 = vmul.f32 %v930, %v366
        %v936 = vmul.f32 %v926, %v367
        %v937 = vmul.f32 %v931, %v366
        %v938 = vmul.f32 %v927, %v367
        %v939 = vmul.f32 %v932, %v366
        %v940 = vmul.f32 %v928, %v367
        %941 = vrot.lane.b32.xlu0 %v867, 15
        %v942 = vpop.permute.xlu0 %941
        %943 = vrot.lane.b32.xlu0 %v869, 15
        %v944 = vpop.permute.xlu0 %943
        %945 = vrot.lane.b32.xlu0 %v871, 15
        %v946 = vpop.permute.xlu0 %945
        %947 = vrot.lane.b32.xlu0 %v873, 15
        %v948 = vpop.permute.xlu0 %947
        %949 = vrot.lane.b32.xlu0 %v868, 15
        %v950 = vpop.permute.xlu0 %949
        %951 = vrot.lane.b32.xlu0 %v870, 15
        %v952 = vpop.permute.xlu0 %951
        %953 = vrot.lane.b32.xlu0 %v872, 15
        %v954 = vpop.permute.xlu0 %953
        %955 = vrot.lane.b32.xlu0 %v874, 15
        %v956 = vpop.permute.xlu0 %955
        %v957 = vsel %vm412, %v942, %v950
        %v958 = vsel %vm412, %v944, %v952
        %v959 = vsel %vm412, %v946, %v954
        %v960 = vsel %vm412, %v948, %v956
        %v961 = vsel %vm412, %v950, %v942
        %v962 = vsel %vm412, %v952, %v944
        %v963 = vsel %vm412, %v954, %v946
        %v964 = vsel %vm412, %v956, %v948
        %v965 = vmul.f32 %v961, %v415
        %v966 = vmul.f32 %v957, %v416
        %v967 = vmul.f32 %v962, %v415
        %v968 = vmul.f32 %v958, %v416
        %v969 = vmul.f32 %v963, %v415
        %v970 = vmul.f32 %v959, %v416
        %v971 = vmul.f32 %v964, %v415
        %v972 = vmul.f32 %v960, %v416
        %973 = vrot.lane.b32.xlu0 %v867, 1
        %v974 = vpop.permute.xlu0 %973
        %975 = vrot.lane.b32.xlu0 %v869, 1
        %v976 = vpop.permute.xlu0 %975
        %977 = vrot.lane.b32.xlu0 %v871, 1
        %v978 = vpop.permute.xlu0 %977
        %979 = vrot.lane.b32.xlu0 %v873, 1
        %v980 = vpop.permute.xlu0 %979
        %981 = vrot.lane.b32.xlu0 %v868, 1
        %v982 = vpop.permute.xlu0 %981
        %983 = vrot.lane.b32.xlu0 %v870, 1
        %v984 = vpop.permute.xlu0 %983
        %985 = vrot.lane.b32.xlu0 %v872, 1
        %v986 = vpop.permute.xlu0 %985
        %987 = vrot.lane.b32.xlu0 %v874, 1
        %v988 = vpop.permute.xlu0 %987
        %v989 = vsel %vm423, %v974, %v982
        %v990 = vsel %vm423, %v976, %v984
        %v991 = vsel %vm423, %v978, %v986
        %v992 = vsel %vm423, %v980, %v988
        %v993 = vsel %vm423, %v982, %v974
        %v994 = vsel %vm423, %v984, %v976
        %v995 = vsel %vm423, %v986, %v978
        %v996 = vsel %vm423, %v988, %v980
        %v997 = vmul.f32 %v993, %v374
        %v998 = vmul.f32 %v989, %v375
        %v999 = vmul.f32 %v994, %v374
        %v1000 = vmul.f32 %v990, %v375
        %v1001 = vmul.f32 %v995, %v374
        %v1002 = vmul.f32 %v991, %v375
        %v1003 = vmul.f32 %v996, %v374
        %v1004 = vmul.f32 %v992, %v375
        %1005 = vrot.lane.b32.xlu0 %v867, 127
        %v1006 = vpop.permute.xlu0 %1005
        %1007 = vrot.lane.b32.xlu0 %v869, 127
        %v1008 = vpop.permute.xlu0 %1007
        %1009 = vrot.lane.b32.xlu0 %v871, 127
        %v1010 = vpop.permute.xlu0 %1009
        %1011 = vrot.lane.b32.xlu0 %v873, 127
        %v1012 = vpop.permute.xlu0 %1011
        %1013 = vrot.lane.b32.xlu0 %v868, 127
        %v1014 = vpop.permute.xlu0 %1013
        %1015 = vrot.lane.b32.xlu0 %v870, 127
        %v1016 = vpop.permute.xlu0 %1015
        %1017 = vrot.lane.b32.xlu0 %v872, 127
        %v1018 = vpop.permute.xlu0 %1017
        %1019 = vrot.lane.b32.xlu0 %v874, 127
        %v1020 = vpop.permute.xlu0 %1019
        %v1021 = vsel %vm432, %v1006, %v1014
        %v1022 = vsel %vm432, %v1008, %v1016
        %v1023 = vsel %vm432, %v1010, %v1018
        %v1024 = vsel %vm432, %v1012, %v1020
        %v1025 = vsel %vm432, %v1014, %v1006
        %v1026 = vsel %vm432, %v1016, %v1008
        %v1027 = vsel %vm432, %v1018, %v1010
        %v1028 = vsel %vm432, %v1020, %v1012
        %v1029 = vmul.f32 %v1021, %v378
        %v1030 = vmul.f32 %v1025, %v379
        %v1031 = vmul.f32 %v1022, %v378
        %v1032 = vmul.f32 %v1026, %v379
        %v1033 = vmul.f32 %v1023, %v378
        %v1034 = vmul.f32 %v1027, %v379
        %v1035 = vmul.f32 %v1024, %v378
        %v1036 = vmul.f32 %v1028, %v379
        %1037 = vrot.lane.b32.xlu0 %v867, 113
        %v1038 = vpop.permute.xlu0 %1037
        %1039 = vrot.lane.b32.xlu0 %v869, 113
        %v1040 = vpop.permute.xlu0 %1039
        %1041 = vrot.lane.b32.xlu0 %v871, 113
        %v1042 = vpop.permute.xlu0 %1041
        %1043 = vrot.lane.b32.xlu0 %v873, 113
        %v1044 = vpop.permute.xlu0 %1043
        %1045 = vrot.lane.b32.xlu0 %v868, 113
        %v1046 = vpop.permute.xlu0 %1045
        %1047 = vrot.lane.b32.xlu0 %v870, 113
        %v1048 = vpop.permute.xlu0 %1047
        %1049 = vrot.lane.b32.xlu0 %v872, 113
        %v1050 = vpop.permute.xlu0 %1049
        %1051 = vrot.lane.b32.xlu0 %v874, 113
        %v1052 = vpop.permute.xlu0 %1051
        %v1053 = vsel %vm441, %v1038, %v1046
        %v1054 = vsel %vm441, %v1040, %v1048
        %v1055 = vsel %vm441, %v1042, %v1050
        %v1056 = vsel %vm441, %v1044, %v1052
        %v1057 = vsel %vm441, %v1046, %v1038
        %v1058 = vsel %vm441, %v1048, %v1040
        %v1059 = vsel %vm441, %v1050, %v1042
        %v1060 = vsel %vm441, %v1052, %v1044
        %v1061 = vmul.f32 %v1053, %v444
        %v1062 = vmul.f32 %v1057, %v445
        %v1063 = vmul.f32 %v1054, %v444
        %v1064 = vmul.f32 %v1058, %v445
        %v1065 = vmul.f32 %v1055, %v444
        %v1066 = vmul.f32 %v1059, %v445
        %v1067 = vmul.f32 %v1056, %v444
        %v1068 = vmul.f32 %v1060, %v445
        %1069 = vrot.lane.b32.xlu0 %v867, 112
        %v1070 = vpop.permute.xlu0 %1069
        %1071 = vrot.lane.b32.xlu0 %v869, 112
        %v1072 = vpop.permute.xlu0 %1071
        %1073 = vrot.lane.b32.xlu0 %v871, 112
        %v1074 = vpop.permute.xlu0 %1073
        %1075 = vrot.lane.b32.xlu0 %v873, 112
        %v1076 = vpop.permute.xlu0 %1075
        %1077 = vrot.lane.b32.xlu0 %v868, 112
        %v1078 = vpop.permute.xlu0 %1077
        %1079 = vrot.lane.b32.xlu0 %v870, 112
        %v1080 = vpop.permute.xlu0 %1079
        %1081 = vrot.lane.b32.xlu0 %v872, 112
        %v1082 = vpop.permute.xlu0 %1081
        %1083 = vrot.lane.b32.xlu0 %v874, 112
        %v1084 = vpop.permute.xlu0 %1083
        %v1085 = vsel %vm452, %v1070, %v1078
        %v1086 = vsel %vm452, %v1072, %v1080
        %v1087 = vsel %vm452, %v1074, %v1082
        %v1088 = vsel %vm452, %v1076, %v1084
        %v1089 = vsel %vm452, %v1078, %v1070
        %v1090 = vsel %vm452, %v1080, %v1072
        %v1091 = vsel %vm452, %v1082, %v1074
        %v1092 = vsel %vm452, %v1084, %v1076
        %v1093 = vmul.f32 %v1085, %v370
        %v1094 = vmul.f32 %v1089, %v371
        %v1095 = vmul.f32 %v1086, %v370
        %v1096 = vmul.f32 %v1090, %v371
        %v1097 = vmul.f32 %v1087, %v370
        %v1098 = vmul.f32 %v1091, %v371
        %v1099 = vmul.f32 %v1088, %v370
        %v1100 = vmul.f32 %v1092, %v371
        %1101 = vrot.lane.b32.xlu0 %v867, 111
        %v1102 = vpop.permute.xlu0 %1101
        %1103 = vrot.lane.b32.xlu0 %v869, 111
        %v1104 = vpop.permute.xlu0 %1103
        %1105 = vrot.lane.b32.xlu0 %v871, 111
        %v1106 = vpop.permute.xlu0 %1105
        %1107 = vrot.lane.b32.xlu0 %v873, 111
        %v1108 = vpop.permute.xlu0 %1107
        %1109 = vrot.lane.b32.xlu0 %v868, 111
        %v1110 = vpop.permute.xlu0 %1109
        %1111 = vrot.lane.b32.xlu0 %v870, 111
        %v1112 = vpop.permute.xlu0 %1111
        %1113 = vrot.lane.b32.xlu0 %v872, 111
        %v1114 = vpop.permute.xlu0 %1113
        %1115 = vrot.lane.b32.xlu0 %v874, 111
        %v1116 = vpop.permute.xlu0 %1115
        %v1117 = vsel %vm461, %v1102, %v1110
        %v1118 = vsel %vm461, %v1104, %v1112
        %v1119 = vsel %vm461, %v1106, %v1114
        %v1120 = vsel %vm461, %v1108, %v1116
        %v1121 = vsel %vm461, %v1110, %v1102
        %v1122 = vsel %vm461, %v1112, %v1104
        %v1123 = vsel %vm461, %v1114, %v1106
        %v1124 = vsel %vm461, %v1116, %v1108
        %v1125 = vmul.f32 %v1117, %v464
        %v1126 = vmul.f32 %v1121, %v465
        %v1127 = vmul.f32 %v1118, %v464
        %v1128 = vmul.f32 %v1122, %v465
        %v1129 = vmul.f32 %v1119, %v464
        %v1130 = vmul.f32 %v1123, %v465
        %v1131 = vmul.f32 %v1120, %v464
        %v1132 = vmul.f32 %v1124, %v465
        %v1133 = vld [vmem:[%s7] sm:$0x7]
        %1135 = vset.pattern.permute.xlu0 0
        %1136 = vperm.xlu0 %1135, %v1133
        %v1137 = vpop.permute.xlu0 %1136
        %v1141 = vcombine.high %v875, %v875
        %vm1143 = vcmask 261120
        %v1144 = vsel %vm1143, %v876, 0
        %1146 = vmatprep.subr.mxu0 %v902
        %1147 = vmatpush1.msra.mxu0 %v901
        %1148 = vmatprep.subr.mxu0 %v904
        %1149 = vmatpush1.msra.mxu0 %v903
        %1150 = vmatprep.subr.mxu0 %v906
        %1151 = vmatpush1.msra.mxu0 %v905
        %1152 = vmatprep.subr.mxu0 %v908
        %1153 = vmatpush1.msra.mxu0 %v907
        %1154 = vmatprep.subr.mxu0 %v934
        %1155 = vmatpush1.msra.mxu0 %v933
        %1156 = vmatprep.subr.mxu0 %v936
        %1157 = vmatpush1.msra.mxu0 %v935
        %1158 = vmatprep.subr.mxu0 %v938
        %1159 = vmatpush1.msra.mxu0 %v937
        %1160 = vmatprep.subr.mxu0 %v940
        %1161 = vmatpush1.msra.mxu0 %v939
        %1162 = vmatprep.subr.mxu0 %v966
        %1163 = vmatpush1.msra.mxu0 %v965
        %1164 = vmatprep.subr.mxu0 %v968
        %1165 = vmatpush1.msra.mxu0 %v967
        %1166 = vmatprep.subr.mxu0 %v970
        %1167 = vmatpush1.msra.mxu0 %v969
        %1168 = vmatprep.subr.mxu0 %v972
        %1169 = vmatpush1.msra.mxu0 %v971
        %1170 = vmatprep.subr.mxu0 %v998
        %1171 = vmatpush1.msra.mxu0 %v997
        %1172 = vmatprep.subr.mxu0 %v1000
        %1173 = vmatpush1.msra.mxu0 %v999
        %1174 = vmatprep.subr.mxu0 %v1002
        %1175 = vmatpush1.msra.mxu0 %v1001
        %1176 = vmatprep.subr.mxu0 %v1004
        %1177 = vmatpush1.msra.mxu0 %v1003
        %1178 = vmatprep.subr.mxu0 %v868
        %1179 = vmatpush1.msra.mxu0 %v867
        %1180 = vmatprep.subr.mxu0 %v870
        %1181 = vmatpush1.msra.mxu0 %v869
        %1182 = vmatprep.subr.mxu0 %v872
        %1183 = vmatpush1.msra.mxu0 %v871
        %1184 = vmatprep.subr.mxu0 %v874
        %1185 = vmatpush1.msra.mxu0 %v873
        %1186 = vmatprep.subr.mxu0 %v1030
        %1187 = vmatpush1.msra.mxu0 %v1029
        %1188 = vmatprep.subr.mxu0 %v1032
        %1189 = vmatpush1.msra.mxu0 %v1031
        %1190 = vmatprep.subr.mxu0 %v1034
        %1191 = vmatpush1.msra.mxu0 %v1033
        %1192 = vmatprep.subr.mxu0 %v1036
        %1193 = vmatpush1.msra.mxu0 %v1035
        %1194 = vmatprep.subr.mxu0 %v1062
        %1195 = vmatpush1.msra.mxu0 %v1061
        %1196 = vmatprep.subr.mxu0 %v1064
        %1197 = vmatpush1.msra.mxu0 %v1063
        %1198 = vmatprep.subr.mxu0 %v1066
        %1199 = vmatpush1.msra.mxu0 %v1065
        %1200 = vmatprep.subr.mxu0 %v1068
        %1201 = vmatpush1.msra.mxu0 %v1067
        %1202 = vmatprep.subr.mxu0 %v1094
        %1203 = vmatpush1.msra.mxu0 %v1093
        %1204 = vmatprep.subr.mxu0 %v1096
        %1205 = vmatpush1.msra.mxu0 %v1095
        %1206 = vmatprep.subr.mxu0 %v1098
        %1207 = vmatpush1.msra.mxu0 %v1097
        %1208 = vmatprep.subr.mxu0 %v1100
        %1209 = vmatpush1.msra.mxu0 %v1099
        %1210 = vmatprep.mubr.f32.mxu0 %v1141
        %1211 = vmatmul.mubr.f32.gmra.mrb[0].mxu0 %v875
        %v1212 = vpop.f32.mrb[0].mxu0
        %v1213 = vadd.f32 %v1137, %v1212
        %v1214 = vpop.f32.mrb[0].mxu0
        %v1215 = vadd.f32 %v1137, %v1214
        %1216 = vdwg.mxu0
        %1217 = vmatprep.subr.mxu0 %v1126
        %1218 = vmatpush1.msra.mxu0 %v1125
        %1219 = vmatprep.subr.mxu0 %v1128
        %1220 = vmatpush1.msra.mxu0 %v1127
        %1221 = vmatprep.subr.mxu0 %v1130
        %1222 = vmatpush1.msra.mxu0 %v1129
        %1223 = vmatprep.subr.mxu0 %v1132
        %1224 = vmatpush1.msra.mxu0 %v1131
        %1225 = vmatprep.subr.mxu0 0.0
        %1226 = vmatpush1.msra.mxu0 0.0
        %1227 = vmatprep.subr.mxu0 0.0
        %1228 = vmatpush1.msra.mxu0 0.0
        %1229 = vmatprep.subr.mxu0 0.0
        %1230 = vmatpush1.msra.mxu0 0.0
        %1231 = vmatprep.subr.mxu0 0.0
        %1232 = vmatpush1.msra.mxu0 0.0
        %1233 = vmatprep.subr.mxu0 0.0
        %1234 = vmatpush1.msra.mxu0 0.0
        %1235 = vmatprep.subr.mxu0 0.0
        %1236 = vmatpush1.msra.mxu0 0.0
        %1237 = vmatprep.subr.mxu0 0.0
        %1238 = vmatpush1.msra.mxu0 0.0
        %1239 = vmatprep.subr.mxu0 0.0
        %1240 = vmatpush1.msra.mxu0 0.0
        %1241 = vmatprep.subr.mxu0 0.0
        %1242 = vmatpush1.msra.mxu0 0.0
        %1243 = vmatprep.subr.mxu0 0.0
        %1244 = vmatpush1.msra.mxu0 0.0
        %1245 = vmatprep.subr.mxu0 0.0
        %1246 = vmatpush1.msra.mxu0 0.0
        %1247 = vmatprep.subr.mxu0 0.0
        %1248 = vmatpush1.msra.mxu0 0.0
        %1249 = vmatprep.subr.mxu0 0.0
        %1250 = vmatpush1.msra.mxu0 0.0
        %1251 = vmatprep.subr.mxu0 0.0
        %1252 = vmatpush1.msra.mxu0 0.0
        %1253 = vmatprep.subr.mxu0 0.0
        %1254 = vmatpush1.msra.mxu0 0.0
        %1255 = vmatprep.subr.mxu0 0.0
        %1256 = vmatpush1.msra.mxu0 0.0
        %1257 = vmatprep.subr.mxu0 0.0
        %1258 = vmatpush1.msra.mxu0 0.0
        %1259 = vmatprep.subr.mxu0 0.0
        %1260 = vmatpush1.msra.mxu0 0.0
        %1261 = vmatprep.subr.mxu0 0.0
        %1262 = vmatpush1.msra.mxu0 0.0
        %1263 = vmatprep.subr.mxu0 0.0
        %1264 = vmatpush1.msra.mxu0 0.0
        %1265 = vmatprep.subr.mxu0 0.0
        %1266 = vmatpush1.msra.mxu0 0.0
        %1267 = vmatprep.subr.mxu0 0.0
        %1268 = vmatpush1.msra.mxu0 0.0
        %1269 = vmatprep.subr.mxu0 0.0
        %1270 = vmatpush1.msra.mxu0 0.0
        %1271 = vmatprep.subr.mxu0 0.0
        %1272 = vmatpush1.msra.mxu0 0.0
        %1273 = vmatprep.subr.mxu0 0.0
        %1274 = vmatpush1.msra.mxu0 0.0
        %1275 = vmatprep.subr.mxu0 0.0
        %1276 = vmatpush1.msra.mxu0 0.0
        %1277 = vmatprep.subr.mxu0 0.0
        %1278 = vmatpush1.msra.mxu0 0.0
        %1279 = vmatprep.subr.mxu0 0.0
        %1280 = vmatpush1.msra.mxu0 0.0
        %1281 = vmatprep.mubr.f32.mxu0 0.0
        %1282 = vmatmul.mubr.f32.gmra.mrb[0].mxu0 %v1144
        %v1283 = vpop.f32.mrb[0].mxu0
        %v1284 = vadd.f32 %v1213, %v1283
        %v1285 = vpop.f32.mrb[0].mxu0
        %v1286 = vadd.f32 %v1215, %v1285
        %1287 = vdwg.mxu0
        %v1290 = vcombine.low %v1284, %v1286
        %1292 = vst [vmem:[%s358] sm:$0x77] %v1290
        %p1293 = scmp.lt.s32.totalorder %s23, 1
        %s1294 = scalar_select %p1293, %s23, 1
        %s1295 = smul.addr %s1294, 2
        %s1296 = smul.addr %s1295, 4
        %s1297 = scalar_lea.vmem %s8, %s1296
        // Predicated region
        $region61: #{tpu_custom_call.1} parent=51 // pred_check
          %p1298 = pneg %p219
        $region62: #{tpu_custom_call.1} parent=51 // pred_check_branch
          %1300 = sbr.rel (%p1298) target = $region64
        $region63: #{tpu_custom_call.1} parent=51 // pred_region
          _
        $region64: #{tpu_custom_call.1} parent=51 // pred_fallthru
          _
      $region52: #{tpu_custom_call.1} parent=5 // pred_fallthru
        _
      %p1301 = scmp.le.s32.totalorder 2, %s18
      // Predicated region
      $region65: #{tpu_custom_call.1} parent=5 // pred_check
        %p1302 = pneg %p1301
      $region66: #{tpu_custom_call.1} parent=5 // pred_check_branch
        %1304 = sbr.rel (%p1302) target = $region68
      $region67: #{tpu_custom_call.1} parent=5 // pred_region
        %s1305 = ssub.s32 %s18, 2
        // Predicated region
        $region69: #{tpu_custom_call.1} parent=67 // pred_check
          %p1306 = pneg %p225
        $region70: #{tpu_custom_call.1} parent=67 // pred_check_branch
          %1308 = sbr.rel (%p1306) target = $region72
        $region71: #{tpu_custom_call.1} parent=67 // pred_region
          %p1309 = scmp.lt.s32.totalorder %s24, 1
          %s1310 = scalar_select %p1309, %s24, 1
          %s1311 = smul.addr %s1310, 2
          %s1312 = smul.addr %s1311, 4
          %s1313 = scalar_lea.vmem %s8, %s1312
        $region72: #{tpu_custom_call.1} parent=67 // pred_fallthru
          _
      $region68: #{tpu_custom_call.1} parent=5 // pred_fallthru
        _
    $region6: #{tpu_custom_call.1} parent=1 // loop_footer
      %s22 = sadd.s32 1, %s18
    $region7: #{tpu_custom_call.1} parent=1 // loop_footer_branch
      %17 = sbr.rel target = $region3
    $region8: #{tpu_custom_call.1} parent=1 // loop_exit
      _
    %1314 = vsyncpa [#allocation3], 1
    %s1315 = scalar_lea.sflag [#allocation3], 1
    %1316 = vsyncpa %s1315, 1
    %1317 = vsyncpa [#allocation5], 1

</llo_original>
